<compile_context>
chip_gen: v5e
topology: v5e:2x2
jax: 0.10.0
libtpu: 0.0.40
codegen_flags: <defaults>
</compile_context>

<pallas_src>
import functools

import jax
import jax.numpy as jnp
from jax.experimental import pallas as pl
from jax.experimental.pallas import tpu as pltpu


_LN_EPS = 1e-5


def _layernorm(x, gamma, beta):
    mean = jnp.mean(x, axis=-1, keepdims=True)
    xc = x - mean
    var = jnp.mean(xc * xc, axis=-1, keepdims=True)
    return xc * jax.lax.rsqrt(var + _LN_EPS) * gamma + beta


def _gelu_tanh(x):
    # TODO(synk): PyTorch nn.GELU() defaults to the exact erf formulation; erf
    # has no reliable Mosaic lowering, so the tanh approximation is used here
    # (and in the in-file reference).
    c = 0.7978845608028654  # sqrt(2/pi)
    return 0.5 * x * (1.0 + jnp.tanh(c * (x + 0.044715 * x * x * x)))


def _round_up(n, m):
    return ((n + m - 1) // m) * m


# --------------------------------------------------------------------------- #
# The single fused kernel: embed (l==0) -> encoder layer l -> head (l==L-1)
# --------------------------------------------------------------------------- #
def _vit_kernel(tok_ref, add_ref, wp_ref,
                ln1g_ref, ln1b_ref, wqkv_ref, bqkv_ref, wo_ref, bo_ref,
                ln2g_ref, ln2b_ref, w1_ref, b1_ref, w2_ref, b2_ref,
                proj_ref, o_ref, h_scr, attn_scr,
                *, n_heads, head_size, seq_len, seq_pad, batch_block):
    l = pl.program_id(1)
    width = n_heads * head_size
    rows = batch_block * seq_pad
    bf16 = jnp.bfloat16

    # ---- patch embedding (first layer step only): one full-slab store ----
    @pl.when(l == 0)
    def _embed():
        h_scr[...] = (jnp.dot(tok_ref[...].astype(bf16), wp_ref[...],
                              preferred_element_type=jnp.float32)
                      + add_ref[...])

    x = h_scr[...]                                   # (rows, W) f32, VMEM-resident

    # ---- multi-head self-attention ----
    h = _layernorm(x, ln1g_ref[...], ln1b_ref[...])
    qkv = (jnp.dot(h.astype(bf16), wqkv_ref[...],
                   preferred_element_type=jnp.float32) + bqkv_ref[...])
    # Fold 1/sqrt(head_size) into q: O(S*W) scale instead of O(S*S).
    q = qkv[:, 0 * width:1 * width] * (head_size ** -0.5)
    k = qkv[:, 1 * width:2 * width]
    v = qkv[:, 2 * width:3 * width]

    if seq_pad != seq_len:   # mask padded key positions out of the softmax
        kmask = jax.lax.broadcasted_iota(jnp.int32, (1, 1, seq_pad), 2) < seq_len

    # TODO(synk): optional attention mask (masked_fill -inf) not wired in;
    # ImageEncoder.forward never passes one.
    for hd in range(n_heads):
        sl = slice(hd * head_size, (hd + 1) * head_size)
        qh = q[:, sl].astype(bf16).reshape(batch_block, seq_pad, head_size)
        kh = k[:, sl].astype(bf16).reshape(batch_block, seq_pad, head_size)
        vh = v[:, sl].astype(bf16).reshape(batch_block, seq_pad, head_size)
        s = jnp.einsum('bqd,bkd->bqk', qh, kh,
                       preferred_element_type=jnp.float32)     # (bb, Sp, Sp)
        if seq_pad != seq_len:
            s = jnp.where(kmask, s, -1e30)
        m = jnp.max(s, axis=-1, keepdims=True)
        e = jnp.exp(s - m)
        denom = jnp.sum(e, axis=-1, keepdims=True)
        oh = jnp.einsum('bqk,bkd->bqd', e.astype(bf16), vh,
                        preferred_element_type=jnp.float32)
        oh = oh * pl.reciprocal(denom, approx=True)  # deferred softmax normalization
        attn_scr[:, sl] = oh.reshape(rows, head_size)

    attn = (jnp.dot(attn_scr[...].astype(bf16), wo_ref[...],
                    preferred_element_type=jnp.float32) + bo_ref[...])
    x = x + attn

    # ---- MLP ----
    h2 = _layernorm(x, ln2g_ref[...], ln2b_ref[...])
    m1 = _gelu_tanh(jnp.dot(h2.astype(bf16), w1_ref[...],
                            preferred_element_type=jnp.float32) + b1_ref[...])
    m2 = (jnp.dot(m1.astype(bf16), w2_ref[...],
                  preferred_element_type=jnp.float32) + b2_ref[...])
    x = x + m2
    h_scr[...] = x

    # ---- cls projection + L2 norm, fused into the last layer step ----
    @pl.when(l == pl.num_programs(1) - 1)
    def _head():
        if batch_block == 1:
            cls = x[0:1, :]
        else:
            cls = jnp.concatenate(
                [x[b * seq_pad:b * seq_pad + 1, :] for b in range(batch_block)],
                axis=0)
        z = jnp.dot(cls.astype(bf16), proj_ref[...],
                    preferred_element_type=jnp.float32)
        # TODO(synk): no epsilon in the denominator, matching `x / torch.norm(x)`.
        o_ref[...] = (z * jax.lax.rsqrt(jnp.sum(z * z, axis=-1, keepdims=True))
                      ).astype(o_ref.dtype)


# --------------------------------------------------------------------------- #
# Wrapper
# --------------------------------------------------------------------------- #
def _extract_patches(x, patch_size):
    # Equivalent to Conv2d(kernel=stride=patch) unfolding + flatten(2).transpose(1, 2).
    B, C, H, W = x.shape
    ph, pw = patch_size
    gh, gw = H // ph, W // pw
    p = x.reshape(B, C, gh, ph, gw, pw).transpose(0, 2, 4, 1, 3, 5)
    return p.reshape(B, gh * gw, C * ph * pw)


def image_encoder_forward(x, params, *, patch_size, n_heads, batch_block=None):
    B = x.shape[0]
    patches = _extract_patches(x, patch_size)              # (B, n_patches, P)
    n_patches, P = patches.shape[1], patches.shape[2]
    width = params["wqkv"].shape[1]
    hidden = params["w1"].shape[2]
    emb_dim = params["projection"].shape[1]
    n_layers = params["wqkv"].shape[0]
    seq_len = n_patches + 1
    seq_pad = _round_up(seq_len, 8)                         # sublane-aligned sequence
    p_pad = _round_up(P, 128)                               # lane-aligned contraction

    if batch_block is None:
        # >=2 batch blocks when possible (feeds both v7x TensorCores) while
        # keeping each block's flattened row count MXU-friendly.
        batch_block = max(1, min(B // 2 if B >= 2 else B, max(1, 256 // seq_pad)))
        while B % batch_block:
            batch_block -= 1
    nb = B // batch_block
    rows = batch_block * seq_pad

    # Token slab: cls row zero (its embedding comes from add_in), patch rows
    # hold raw patches, padded rows zero.  Zero-pad P -> p_pad.
    tok = jnp.zeros((B, seq_pad, p_pad), jnp.float32)
    tok = tok.at[:, 1:seq_len, :P].set(patches)
    tok_in = tok.reshape(B * seq_pad, p_pad)

    # Additive slab: cls_token + pe[0] on cls rows, b_patch + pe[1:] on patch
    # rows, zero on padded rows (merged once here -> single in-kernel store).
    add = jnp.zeros((B, seq_pad, width), jnp.float32)
    add = add.at[:, 0, :].set(params["cls_token"][0] + params["pe"][0])
    add = add.at[:, 1:seq_len, :].set(params["b_patch"] + params["pe"][1:seq_len])
    add_in = add.reshape(B * seq_pad, width)

    w_patch = jnp.zeros((p_pad, width), params["w_patch"].dtype)
    w_patch = w_patch.at[:P, :].set(params["w_patch"])

    kernel = functools.partial(
        _vit_kernel, n_heads=n_heads, head_size=width // n_heads,
        seq_len=seq_len, seq_pad=seq_pad, batch_block=batch_block)

    def batch_spec(tail):
        return pl.BlockSpec((rows,) + tail, lambda bi, l: (bi, 0))

    def const_spec(shape):
        return pl.BlockSpec(shape, lambda bi, l: (0,) * len(shape))

    def layer_spec(tail):
        nd = len(tail)
        return pl.BlockSpec((None,) + tail, lambda bi, l: (l,) + (0,) * nd)

    out = pl.pallas_call(
        kernel,
        out_shape=jax.ShapeDtypeStruct((nb, batch_block, emb_dim), jnp.float32),
        grid_spec=pltpu.PrefetchScalarGridSpec(
            num_scalar_prefetch=0,
            grid=(nb, n_layers),
            in_specs=[
                batch_spec((p_pad,)),                  # tok_in
                batch_spec((width,)),                  # add_in
                const_spec((p_pad, width)),            # w_patch (bf16)
                layer_spec((1, width)),                # ln1 gamma
                layer_spec((1, width)),                # ln1 beta
                layer_spec((width, 3 * width)),        # fused W_qkv (bf16)
                layer_spec((1, 3 * width)),            # fused b_qkv
                layer_spec((width, width)),            # W_o (bf16)
                layer_spec((1, width)),                # b_o
                layer_spec((1, width)),                # ln2 gamma
                layer_spec((1, width)),                # ln2 beta
                layer_spec((width, hidden)),           # W_1 (bf16)
                layer_spec((1, hidden)),               # b_1
                layer_spec((hidden, width)),           # W_2 (bf16)
                layer_spec((1, width)),                # b_2
                const_spec((width, emb_dim)),          # projection (bf16)
            ],
            out_specs=pl.BlockSpec((None, batch_block, emb_dim),
                                   lambda bi, l: (bi, 0, 0)),
            scratch_shapes=[pltpu.VMEM((rows, width), jnp.float32),   # resident h
                            pltpu.VMEM((rows, width), jnp.float32)],  # attention out
        ),
        compiler_params=pltpu.CompilerParams(
            dimension_semantics=("parallel", "arbitrary")),
    )(tok_in, add_in, w_patch,
      params["ln1g"], params["ln1b"], params["wqkv"], params["bqkv"],
      params["wo"], params["bo"], params["ln2g"], params["ln2b"],
      params["w1"], params["b1"], params["w2"], params["b2"],
      params["projection"])
    return out.reshape(B, emb_dim)


# --------------------------------------------------------------------------- #
# Parameters / positional embedding / pure-JAX reference
# --------------------------------------------------------------------------- #
def make_positional_embedding(seq_len, width):
    pos = jnp.arange(seq_len, dtype=jnp.float32)[:, None]
    idx = jnp.arange(width)[None, :]
    even_angle = pos / jnp.power(10000.0, idx.astype(jnp.float32) / width)
    odd_angle = pos / jnp.power(10000.0, (idx - 1).astype(jnp.float32) / width)
    return jnp.where(idx % 2 == 0, jnp.sin(even_angle), jnp.cos(odd_angle))


def init_params(key, *, width, patch_dim, seq_len, n_layers, emb_dim, mlp_ratio=4):
    # Weight matrices are stored in bf16 (MXU fast path / half the weight DMA,
    # per the perf review); biases, LayerNorm params, cls token and pe stay f32.
    def linear(k, fan_in, fan_out):
        kw, kb = jax.random.split(k)
        bound = fan_in ** -0.5
        w = jax.random.uniform(kw, (fan_in, fan_out), jnp.float32, -bound, bound)
        b = jax.random.uniform(kb, (1, fan_out), jnp.float32, -bound, bound)
        return w, b

    keys = jax.random.split(key, 3 + n_layers)
    hidden = mlp_ratio * width
    w_patch, b_patch = linear(keys[0], patch_dim, width)
    cls_token = jax.random.normal(keys[1], (1, width), jnp.float32)
    projection = jax.random.normal(keys[2], (width, emb_dim), jnp.float32)

    wqkv, bqkv, wo, bo, w1, b1, w2, b2 = ([] for _ in range(8))
    for li in range(n_layers):
        lk = jax.random.split(keys[3 + li], 6)
        wq, bq = linear(lk[0], width, width)
        wk, bk = linear(lk[1], width, width)
        wv, bv = linear(lk[2], width, width)
        wqkv.append(jnp.concatenate([wq, wk, wv], axis=1))
        bqkv.append(jnp.concatenate([bq, bk, bv], axis=1))
        w, b = linear(lk[3], width, width); wo.append(w); bo.append(b)
        w, b = linear(lk[4], width, hidden); w1.append(w); b1.append(b)
        w, b = linear(lk[5], hidden, width); w2.append(w); b2.append(b)

    bf16 = jnp.bfloat16
    return {
        "w_patch": w_patch.astype(bf16), "b_patch": b_patch,
        "cls_token": cls_token,
        "pe": make_positional_embedding(seq_len, width),
        "projection": projection.astype(bf16),
        "ln1g": jnp.ones((n_layers, 1, width), jnp.float32),
        "ln1b": jnp.zeros((n_layers, 1, width), jnp.float32),
        "ln2g": jnp.ones((n_layers, 1, width), jnp.float32),
        "ln2b": jnp.zeros((n_layers, 1, width), jnp.float32),
        "wqkv": jnp.stack(wqkv).astype(bf16), "bqkv": jnp.stack(bqkv),
        "wo": jnp.stack(wo).astype(bf16), "bo": jnp.stack(bo),
        "w1": jnp.stack(w1).astype(bf16), "b1": jnp.stack(b1),
        "w2": jnp.stack(w2).astype(bf16), "b2": jnp.stack(b2),
    }


def _reference_forward(x, params, *, patch_size, n_heads):
    # Pure-JAX reference mirroring the kernel's mixed precision (bf16 MXU
    # operands, f32 accumulate / norms) so the check tolerance stays tight; the
    # only intentional differences are exact softmax division vs. the kernel's
    # EUP approximate reciprocal.
    bf16, f32 = jnp.bfloat16, jnp.float32

    def dot(a, b):
        return jnp.dot(a.astype(bf16), b.astype(bf16), preferred_element_type=f32)

    patches = _extract_patches(x, patch_size)
    B = x.shape[0]
    width = params["wqkv"].shape[1]
    head_size = width // n_heads
    n_layers = params["wqkv"].shape[0]

    tok = dot(patches, params["w_patch"]) + params["b_patch"]
    cls = jnp.broadcast_to(params["cls_token"][None], (B, 1, width))
    h = jnp.concatenate([cls, tok], axis=1) + params["pe"][None]

    for li in range(n_layers):
        z = _layernorm(h, params["ln1g"][li], params["ln1b"][li])
        qkv = dot(z, params["wqkv"][li]) + params["bqkv"][li]
        q = qkv[..., :width] * (head_size ** -0.5)
        k = qkv[..., width:2 * width]
        v = qkv[..., 2 * width:]
        outs = []
        for hd in range(n_heads):
            sl = slice(hd * head_size, (hd + 1) * head_size)
            s = jnp.einsum("bqd,bkd->bqk", q[..., sl].astype(bf16),
                           k[..., sl].astype(bf16), preferred_element_type=f32)
            s = s - jnp.max(s, axis=-1, keepdims=True)
            e = jnp.exp(s)
            oh = jnp.einsum("bqk,bkd->bqd", e.astype(bf16),
                            v[..., sl].astype(bf16), preferred_element_type=f32)
            outs.append(oh / jnp.sum(e, axis=-1, keepdims=True))
        attn = jnp.concatenate(outs, axis=-1)
        h = h + dot(attn, params["wo"][li]) + params["bo"][li]
        z2 = _layernorm(h, params["ln2g"][li], params["ln2b"][li])
        m = _gelu_tanh(dot(z2, params["w1"][li]) + params["b1"][li])
        h = h + dot(m, params["w2"][li]) + params["b2"][li]

    z = dot(h[:, 0, :], params["projection"])
    return z / jnp.sqrt(jnp.sum(z * z, axis=-1, keepdims=True))


if __name__ == "__main__":
    width = 32
    img_size = (28, 28)
    patch_size = (14, 14)
    n_channels = 1
    n_layers = 2
    n_heads = 2
    emb_dim = 32
    batch = 2

    n_patches = (img_size[0] // patch_size[0]) * (img_size[1] // patch_size[1])
    seq_len = n_patches + 1
    patch_dim = n_channels * patch_size[0] * patch_size[1]

    key = jax.random.PRNGKey(0)
    kx, kp = jax.random.split(key)
    x = jax.random.normal(kx, (batch, n_channels, *img_size), dtype=jnp.float32)
    params = init_params(kp, width=width, patch_dim=patch_dim, seq_len=seq_len,
                         n_layers=n_layers, emb_dim=emb_dim)

    fwd = jax.jit(functools.partial(image_encoder_forward,
                                    patch_size=patch_size, n_heads=n_heads))
    out = jax.block_until_ready(fwd(x, params))
    assert out.shape == (batch, emb_dim)

    ref = _reference_forward(x, params, patch_size=patch_size, n_heads=n_heads)
    max_err = float(jnp.max(jnp.abs(out - ref)))
    assert jnp.allclose(out, ref, atol=5e-3, rtol=5e-3), max_err

    print("KERNEL_OK")
</pallas_src>

<mosaic_0001>
module attributes {stable_mosaic.version = 11 : i64} {
  func.func @_vit_kernel(%arg0: i32, %arg1: i32, %arg2: memref<8x256xf32, #tpu.memory_space<vmem>>, %arg3: memref<8x32xf32, #tpu.memory_space<vmem>>, %arg4: memref<256x32xbf16, #tpu.memory_space<vmem>>, %arg5: memref<1x1x32xf32, #tpu.memory_space<vmem>>, %arg6: memref<1x1x32xf32, #tpu.memory_space<vmem>>, %arg7: memref<1x32x96xbf16, #tpu.memory_space<vmem>>, %arg8: memref<1x1x96xf32, #tpu.memory_space<vmem>>, %arg9: memref<1x32x32xbf16, #tpu.memory_space<vmem>>, %arg10: memref<1x1x32xf32, #tpu.memory_space<vmem>>, %arg11: memref<1x1x32xf32, #tpu.memory_space<vmem>>, %arg12: memref<1x1x32xf32, #tpu.memory_space<vmem>>, %arg13: memref<1x32x128xbf16, #tpu.memory_space<vmem>>, %arg14: memref<1x1x128xf32, #tpu.memory_space<vmem>>, %arg15: memref<1x128x32xbf16, #tpu.memory_space<vmem>>, %arg16: memref<1x1x32xf32, #tpu.memory_space<vmem>>, %arg17: memref<32x32xbf16, #tpu.memory_space<vmem>>, %arg18: memref<1x1x32xf32, #tpu.memory_space<vmem>>, %arg19: memref<8x32xf32, #tpu.memory_space<vmem>>, %arg20: memref<8x32xf32, #tpu.memory_space<vmem>>) attributes {dimension_semantics = [#tpu.dimension_semantics<parallel>, #tpu.dimension_semantics<arbitrary>], iteration_bounds = array<i64: 2, 2>, scalar_prefetch = 0 : i64, scratch_operands = 2 : i64, tpu.core_type = #tpu.core_type<tc>, window_params = [{transform_indices = @transform_0, window_bounds = array<i64: 8, 256>}, {transform_indices = @transform_1, window_bounds = array<i64: 8, 32>}, {pipeline_mode = #tpu.pipeline_mode<synchronous>, transform_indices = @transform_2, window_bounds = array<i64: 256, 32>}, {transform_indices = @transform_3, window_bounds = array<i64: 1, 1, 32>}, {transform_indices = @transform_4, window_bounds = array<i64: 1, 1, 32>}, {transform_indices = @transform_5, window_bounds = array<i64: 1, 32, 96>}, {transform_indices = @transform_6, window_bounds = array<i64: 1, 1, 96>}, {transform_indices = @transform_7, window_bounds = array<i64: 1, 32, 32>}, {transform_indices = @transform_8, window_bounds = array<i64: 1, 1, 32>}, {transform_indices = @transform_9, window_bounds = array<i64: 1, 1, 32>}, {transform_indices = @transform_10, window_bounds = array<i64: 1, 1, 32>}, {transform_indices = @transform_11, window_bounds = array<i64: 1, 32, 128>}, {transform_indices = @transform_12, window_bounds = array<i64: 1, 1, 128>}, {transform_indices = @transform_13, window_bounds = array<i64: 1, 128, 32>}, {transform_indices = @transform_14, window_bounds = array<i64: 1, 1, 32>}, {pipeline_mode = #tpu.pipeline_mode<synchronous>, transform_indices = @transform_15, window_bounds = array<i64: 32, 32>}, {transform_indices = @transform_16, window_bounds = array<i64: 1, 1, 32>}]} {
    %c0_i32 = arith.constant 0 : i32
    %0 = arith.cmpi eq, %arg1, %c0_i32 : i32
    %1 = arith.extui %0 : i1 to i32
    %c0_i32_0 = arith.constant 0 : i32
    %2 = arith.cmpi ne, %1, %c0_i32_0 : i32
    scf.if %2 {
      %c0_74 = arith.constant 0 : index
      %c0_75 = arith.constant 0 : index
      %168 = vector.load %arg2[%c0_74, %c0_75] : memref<8x256xf32, #tpu.memory_space<vmem>>, vector<8x256xf32>
      %169 = arith.truncf %168 : vector<8x256xf32> to vector<8x256xbf16>
      %c0_76 = arith.constant 0 : index
      %c0_77 = arith.constant 0 : index
      %170 = vector.load %arg4[%c0_76, %c0_77] : memref<256x32xbf16, #tpu.memory_space<vmem>>, vector<256x32xbf16>
      %cst_78 = arith.constant dense<0.000000e+00> : vector<8x32xf32>
      %171 = tpu.matmul %169, %170, %cst_78 {dimension_numbers = #tpu.dot_dimension_numbers<[1], [0], [0], [1], [0, 0, 1, 1], [], []>} : vector<8x256xbf16>, vector<256x32xbf16>, vector<8x32xf32> -> vector<8x32xf32>
      %c0_79 = arith.constant 0 : index
      %c0_80 = arith.constant 0 : index
      %172 = vector.load %arg3[%c0_79, %c0_80] : memref<8x32xf32, #tpu.memory_space<vmem>>, vector<8x32xf32>
      %173 = arith.addf %171, %172 : vector<8x32xf32>
      %c0_81 = arith.constant 0 : index
      %c0_82 = arith.constant 0 : index
      %174 = vector.load %arg19[%c0_81, %c0_82] : memref<8x32xf32, #tpu.memory_space<vmem>>, vector<8x32xf32>
      tpu.vector_store %arg19[%c0_81, %c0_82], %173 {strides = array<i32>} : memref<8x32xf32, #tpu.memory_space<vmem>>, vector<8x32xf32>,
    } else {
    }
    %c0 = arith.constant 0 : index
    %c0_1 = arith.constant 0 : index
    %3 = vector.load %arg19[%c0, %c0_1] : memref<8x32xf32, #tpu.memory_space<vmem>>, vector<8x32xf32>
    %c0_2 = arith.constant 0 : index
    %c0_3 = arith.constant 0 : index
    %c0_4 = arith.constant 0 : index
    %4 = vector.load %arg5[%c0_2, %c0_3, %c0_4] : memref<1x1x32xf32, #tpu.memory_space<vmem>>, vector<1x1x32xf32>
    %5 = vector.shape_cast %4 : vector<1x1x32xf32> to vector<1x32xf32>
    %c0_5 = arith.constant 0 : index
    %c0_6 = arith.constant 0 : index
    %c0_7 = arith.constant 0 : index
    %6 = vector.load %arg6[%c0_5, %c0_6, %c0_7] : memref<1x1x32xf32, #tpu.memory_space<vmem>>, vector<1x1x32xf32>
    %7 = vector.shape_cast %6 : vector<1x1x32xf32> to vector<1x32xf32>
    %cst = arith.constant dense<0.000000e+00> : vector<8xf32>
    %8 = vector.multi_reduction <add>, %3, %cst [1] : vector<8x32xf32> to vector<8xf32>
    %9 = vector.shape_cast %8 : vector<8xf32> to vector<8x1xf32>
    %cst_8 = arith.constant 3.200000e+01 : f32
    %10 = vector.broadcast %cst_8 : f32 to vector<8x1xf32>
    %11 = arith.divf %9, %10 : vector<8x1xf32>
    %12 = vector.broadcast %11 : vector<8x1xf32> to vector<8x32xf32>
    %13 = arith.subf %3, %12 : vector<8x32xf32>
    %14 = arith.mulf %13, %13 : vector<8x32xf32>
    %cst_9 = arith.constant dense<0.000000e+00> : vector<8xf32>
    %15 = vector.multi_reduction <add>, %14, %cst_9 [1] : vector<8x32xf32> to vector<8xf32>
    %16 = vector.shape_cast %15 : vector<8xf32> to vector<8x1xf32>
    %cst_10 = arith.constant 3.200000e+01 : f32
    %17 = vector.broadcast %cst_10 : f32 to vector<8x1xf32>
    %18 = arith.divf %16, %17 : vector<8x1xf32>
    %cst_11 = arith.constant 9.99999974E-6 : f32
    %19 = vector.broadcast %cst_11 : f32 to vector<8x1xf32>
    %20 = arith.addf %18, %19 : vector<8x1xf32>
    %21 = math.rsqrt %20 : vector<8x1xf32>
    %22 = vector.broadcast %21 : vector<8x1xf32> to vector<8x32xf32>
    %23 = arith.mulf %13, %22 : vector<8x32xf32>
    %24 = vector.broadcast %5 : vector<1x32xf32> to vector<8x32xf32>
    %25 = arith.mulf %23, %24 : vector<8x32xf32>
    %26 = vector.broadcast %7 : vector<1x32xf32> to vector<8x32xf32>
    %27 = arith.addf %25, %26 : vector<8x32xf32>
    %28 = arith.truncf %27 : vector<8x32xf32> to vector<8x32xbf16>
    %c0_12 = arith.constant 0 : index
    %c0_13 = arith.constant 0 : index
    %c0_14 = arith.constant 0 : index
    %29 = vector.load %arg7[%c0_12, %c0_13, %c0_14] : memref<1x32x96xbf16, #tpu.memory_space<vmem>>, vector<1x32x96xbf16>
    %30 = vector.shape_cast %29 : vector<1x32x96xbf16> to vector<32x96xbf16>
    %cst_15 = arith.constant dense<0.000000e+00> : vector<8x96xf32>
    %31 = tpu.matmul %28, %30, %cst_15 {dimension_numbers = #tpu.dot_dimension_numbers<[1], [0], [0], [1], [0, 0, 1, 1], [], []>} : vector<8x32xbf16>, vector<32x96xbf16>, vector<8x96xf32> -> vector<8x96xf32>
    %c0_16 = arith.constant 0 : index
    %c0_17 = arith.constant 0 : index
    %c0_18 = arith.constant 0 : index
    %32 = vector.load %arg8[%c0_16, %c0_17, %c0_18] : memref<1x1x96xf32, #tpu.memory_space<vmem>>, vector<1x1x96xf32>
    %33 = vector.shape_cast %32 : vector<1x1x96xf32> to vector<1x96xf32>
    %34 = vector.broadcast %33 : vector<1x96xf32> to vector<8x96xf32>
    %35 = arith.addf %31, %34 : vector<8x96xf32>
    %36 = vector.extract_strided_slice %35 {offsets = [0, 0], sizes = [8, 32], strides = [1, 1]} : vector<8x96xf32> to vector<8x32xf32>
    %cst_19 = arith.constant 2.500000e-01 : f32
    %37 = vector.broadcast %cst_19 : f32 to vector<8x32xf32>
    %38 = arith.mulf %36, %37 : vector<8x32xf32>
    %39 = vector.extract_strided_slice %35 {offsets = [0, 32], sizes = [8, 32], strides = [1, 1]} : vector<8x96xf32> to vector<8x32xf32>
    %40 = vector.extract_strided_slice %35 {offsets = [0, 64], sizes = [8, 32], strides = [1, 1]} : vector<8x96xf32> to vector<8x32xf32>
    %41 = tpu.iota {dimensions = array<i32: 2>} : vector<1x1x8xi32>
    %c5_i32 = arith.constant 5 : i32
    %42 = vector.broadcast %c5_i32 : i32 to vector<1x1x8xi32>
    %43 = arith.cmpi slt, %41, %42 : vector<1x1x8xi32>
    %44 = vector.extract_strided_slice %38 {offsets = [0, 0], sizes = [8, 16], strides = [1, 1]} : vector<8x32xf32> to vector<8x16xf32>
    %45 = arith.truncf %44 : vector<8x16xf32> to vector<8x16xbf16>
    %46 = vector.shape_cast %45 : vector<8x16xbf16> to vector<1x8x16xbf16>
    %47 = vector.extract_strided_slice %39 {offsets = [0, 0], sizes = [8, 16], strides = [1, 1]} : vector<8x32xf32> to vector<8x16xf32>
    %48 = arith.truncf %47 : vector<8x16xf32> to vector<8x16xbf16>
    %49 = vector.shape_cast %48 : vector<8x16xbf16> to vector<1x8x16xbf16>
    %50 = vector.extract_strided_slice %40 {offsets = [0, 0], sizes = [8, 16], strides = [1, 1]} : vector<8x32xf32> to vector<8x16xf32>
    %51 = arith.truncf %50 : vector<8x16xf32> to vector<8x16xbf16>
    %52 = vector.shape_cast %51 : vector<8x16xbf16> to vector<1x8x16xbf16>
    "tpu.trace_start"() <{level = 10 : i32, message = "bqd,bkd->bqk"}> : () -> ()
    %cst_20 = arith.constant dense<0.000000e+00> : vector<1x8x8xf32>
    %53 = tpu.matmul %46, %49, %cst_20 {dimension_numbers = #tpu.dot_dimension_numbers<[2], [2], [1], [1], [0, 0, 0, 1, 1, 1], [0], [0]>} : vector<1x8x16xbf16>, vector<1x8x16xbf16>, vector<1x8x8xf32> -> vector<1x8x8xf32>
    %cst_21 = arith.constant -1.000000e+30 : f32
    "tpu.trace_stop"() : () -> ()
    %54 = vector.shape_cast %43 : vector<1x1x8xi1> to vector<1x1x8xi1>
    %55 = vector.broadcast %54 : vector<1x1x8xi1> to vector<1x8x8xi1>
    %56 = vector.broadcast %cst_21 : f32 to vector<1x8x8xf32>
    %57 = arith.select %55, %53, %56 : vector<1x8x8xi1>, vector<1x8x8xf32>
    %cst_22 = arith.constant dense<0xFF800000> : vector<1x8xf32>
    %58 = vector.multi_reduction <maximumf>, %57, %cst_22 [2] : vector<1x8x8xf32> to vector<1x8xf32>
    %59 = vector.shape_cast %58 : vector<1x8xf32> to vector<1x8x1xf32>
    %60 = vector.broadcast %59 : vector<1x8x1xf32> to vector<1x8x8xf32>
    %61 = arith.subf %57, %60 : vector<1x8x8xf32>
    %62 = math.exp %61 : vector<1x8x8xf32>
    %cst_23 = arith.constant dense<0.000000e+00> : vector<1x8xf32>
    %63 = vector.multi_reduction <add>, %62, %cst_23 [2] : vector<1x8x8xf32> to vector<1x8xf32>
    %64 = vector.shape_cast %63 : vector<1x8xf32> to vector<1x8x1xf32>
    %65 = arith.truncf %62 : vector<1x8x8xf32> to vector<1x8x8xbf16>
    "tpu.trace_start"() <{level = 10 : i32, message = "bqk,bkd->bqd"}> : () -> ()
    %cst_24 = arith.constant dense<0.000000e+00> : vector<1x8x16xf32>
    %66 = tpu.matmul %65, %52, %cst_24 {dimension_numbers = #tpu.dot_dimension_numbers<[2], [1], [1], [2], [0, 0, 0, 1, 1, 2], [0], [0]>} : vector<1x8x8xbf16>, vector<1x8x16xbf16>, vector<1x8x16xf32> -> vector<1x8x16xf32>
    "tpu.trace_stop"() : () -> ()
    %67 = tpu.reciprocal %64 {approx = true} : vector<1x8x1xf32> -> vector<1x8x1xf32>
    %68 = vector.broadcast %67 : vector<1x8x1xf32> to vector<1x8x16xf32>
    %69 = arith.mulf %66, %68 : vector<1x8x16xf32>
    %70 = vector.shape_cast %69 : vector<1x8x16xf32> to vector<8x16xf32>
    %c0_25 = arith.constant 0 : index
    %c0_26 = arith.constant 0 : index
    %71 = vector.load %arg20[%c0_25, %c0_26] : memref<8x32xf32, #tpu.memory_space<vmem>>, vector<8x16xf32>
    tpu.vector_store %arg20[%c0_25, %c0_26], %70 {strides = array<i32>} : memref<8x32xf32, #tpu.memory_space<vmem>>, vector<8x16xf32>,
    %72 = vector.extract_strided_slice %38 {offsets = [0, 16], sizes = [8, 16], strides = [1, 1]} : vector<8x32xf32> to vector<8x16xf32>
    %73 = arith.truncf %72 : vector<8x16xf32> to vector<8x16xbf16>
    %74 = vector.shape_cast %73 : vector<8x16xbf16> to vector<1x8x16xbf16>
    %75 = vector.extract_strided_slice %39 {offsets = [0, 16], sizes = [8, 16], strides = [1, 1]} : vector<8x32xf32> to vector<8x16xf32>
    %76 = arith.truncf %75 : vector<8x16xf32> to vector<8x16xbf16>
    %77 = vector.shape_cast %76 : vector<8x16xbf16> to vector<1x8x16xbf16>
    %78 = vector.extract_strided_slice %40 {offsets = [0, 16], sizes = [8, 16], strides = [1, 1]} : vector<8x32xf32> to vector<8x16xf32>
    %79 = arith.truncf %78 : vector<8x16xf32> to vector<8x16xbf16>
    %80 = vector.shape_cast %79 : vector<8x16xbf16> to vector<1x8x16xbf16>
    "tpu.trace_start"() <{level = 10 : i32, message = "bqd,bkd->bqk"}> : () -> ()
    %cst_27 = arith.constant dense<0.000000e+00> : vector<1x8x8xf32>
    %81 = tpu.matmul %74, %77, %cst_27 {dimension_numbers = #tpu.dot_dimension_numbers<[2], [2], [1], [1], [0, 0, 0, 1, 1, 1], [0], [0]>} : vector<1x8x16xbf16>, vector<1x8x16xbf16>, vector<1x8x8xf32> -> vector<1x8x8xf32>
    %cst_28 = arith.constant -1.000000e+30 : f32
    "tpu.trace_stop"() : () -> ()
    %82 = vector.shape_cast %43 : vector<1x1x8xi1> to vector<1x1x8xi1>
    %83 = vector.broadcast %82 : vector<1x1x8xi1> to vector<1x8x8xi1>
    %84 = vector.broadcast %cst_28 : f32 to vector<1x8x8xf32>
    %85 = arith.select %83, %81, %84 : vector<1x8x8xi1>, vector<1x8x8xf32>
    %cst_29 = arith.constant dense<0xFF800000> : vector<1x8xf32>
    %86 = vector.multi_reduction <maximumf>, %85, %cst_29 [2] : vector<1x8x8xf32> to vector<1x8xf32>
    %87 = vector.shape_cast %86 : vector<1x8xf32> to vector<1x8x1xf32>
    %88 = vector.broadcast %87 : vector<1x8x1xf32> to vector<1x8x8xf32>
    %89 = arith.subf %85, %88 : vector<1x8x8xf32>
    %90 = math.exp %89 : vector<1x8x8xf32>
    %cst_30 = arith.constant dense<0.000000e+00> : vector<1x8xf32>
    %91 = vector.multi_reduction <add>, %90, %cst_30 [2] : vector<1x8x8xf32> to vector<1x8xf32>
    %92 = vector.shape_cast %91 : vector<1x8xf32> to vector<1x8x1xf32>
    %93 = arith.truncf %90 : vector<1x8x8xf32> to vector<1x8x8xbf16>
    "tpu.trace_start"() <{level = 10 : i32, message = "bqk,bkd->bqd"}> : () -> ()
    %cst_31 = arith.constant dense<0.000000e+00> : vector<1x8x16xf32>
    %94 = tpu.matmul %93, %80, %cst_31 {dimension_numbers = #tpu.dot_dimension_numbers<[2], [1], [1], [2], [0, 0, 0, 1, 1, 2], [0], [0]>} : vector<1x8x8xbf16>, vector<1x8x16xbf16>, vector<1x8x16xf32> -> vector<1x8x16xf32>
    "tpu.trace_stop"() : () -> ()
    %95 = tpu.reciprocal %92 {approx = true} : vector<1x8x1xf32> -> vector<1x8x1xf32>
    %96 = vector.broadcast %95 : vector<1x8x1xf32> to vector<1x8x16xf32>
    %97 = arith.mulf %94, %96 : vector<1x8x16xf32>
    %98 = vector.shape_cast %97 : vector<1x8x16xf32> to vector<8x16xf32>
    %c0_32 = arith.constant 0 : index
    %c16 = arith.constant 16 : index
    %99 = vector.load %arg20[%c0_32, %c16] : memref<8x32xf32, #tpu.memory_space<vmem>>, vector<8x16xf32>
    tpu.vector_store %arg20[%c0_32, %c16], %98 {strides = array<i32>} : memref<8x32xf32, #tpu.memory_space<vmem>>, vector<8x16xf32>,
    %c0_33 = arith.constant 0 : index
    %c0_34 = arith.constant 0 : index
    %100 = vector.load %arg20[%c0_33, %c0_34] : memref<8x32xf32, #tpu.memory_space<vmem>>, vector<8x32xf32>
    %101 = arith.truncf %100 : vector<8x32xf32> to vector<8x32xbf16>
    %c0_35 = arith.constant 0 : index
    %c0_36 = arith.constant 0 : index
    %c0_37 = arith.constant 0 : index
    %102 = vector.load %arg9[%c0_35, %c0_36, %c0_37] : memref<1x32x32xbf16, #tpu.memory_space<vmem>>, vector<1x32x32xbf16>
    %103 = vector.shape_cast %102 : vector<1x32x32xbf16> to vector<32x32xbf16>
    %cst_38 = arith.constant dense<0.000000e+00> : vector<8x32xf32>
    %104 = tpu.matmul %101, %103, %cst_38 {dimension_numbers = #tpu.dot_dimension_numbers<[1], [0], [0], [1], [0, 0, 1, 1], [], []>} : vector<8x32xbf16>, vector<32x32xbf16>, vector<8x32xf32> -> vector<8x32xf32>
    %c0_39 = arith.constant 0 : index
    %c0_40 = arith.constant 0 : index
    %c0_41 = arith.constant 0 : index
    %105 = vector.load %arg10[%c0_39, %c0_40, %c0_41] : memref<1x1x32xf32, #tpu.memory_space<vmem>>, vector<1x1x32xf32>
    %106 = vector.shape_cast %105 : vector<1x1x32xf32> to vector<1x32xf32>
    %107 = vector.broadcast %106 : vector<1x32xf32> to vector<8x32xf32>
    %108 = arith.addf %104, %107 : vector<8x32xf32>
    %109 = arith.addf %3, %108 : vector<8x32xf32>
    %c0_42 = arith.constant 0 : index
    %c0_43 = arith.constant 0 : index
    %c0_44 = arith.constant 0 : index
    %110 = vector.load %arg11[%c0_42, %c0_43, %c0_44] : memref<1x1x32xf32, #tpu.memory_space<vmem>>, vector<1x1x32xf32>
    %111 = vector.shape_cast %110 : vector<1x1x32xf32> to vector<1x32xf32>
    %c0_45 = arith.constant 0 : index
    %c0_46 = arith.constant 0 : index
    %c0_47 = arith.constant 0 : index
    %112 = vector.load %arg12[%c0_45, %c0_46, %c0_47] : memref<1x1x32xf32, #tpu.memory_space<vmem>>, vector<1x1x32xf32>
    %113 = vector.shape_cast %112 : vector<1x1x32xf32> to vector<1x32xf32>
    %cst_48 = arith.constant dense<0.000000e+00> : vector<8xf32>
    %114 = vector.multi_reduction <add>, %109, %cst_48 [1] : vector<8x32xf32> to vector<8xf32>
    %115 = vector.shape_cast %114 : vector<8xf32> to vector<8x1xf32>
    %cst_49 = arith.constant 3.200000e+01 : f32
    %116 = vector.broadcast %cst_49 : f32 to vector<8x1xf32>
    %117 = arith.divf %115, %116 : vector<8x1xf32>
    %118 = vector.broadcast %117 : vector<8x1xf32> to vector<8x32xf32>
    %119 = arith.subf %109, %118 : vector<8x32xf32>
    %120 = arith.mulf %119, %119 : vector<8x32xf32>
    %cst_50 = arith.constant dense<0.000000e+00> : vector<8xf32>
    %121 = vector.multi_reduction <add>, %120, %cst_50 [1] : vector<8x32xf32> to vector<8xf32>
    %122 = vector.shape_cast %121 : vector<8xf32> to vector<8x1xf32>
    %cst_51 = arith.constant 3.200000e+01 : f32
    %123 = vector.broadcast %cst_51 : f32 to vector<8x1xf32>
    %124 = arith.divf %122, %123 : vector<8x1xf32>
    %cst_52 = arith.constant 9.99999974E-6 : f32
    %125 = vector.broadcast %cst_52 : f32 to vector<8x1xf32>
    %126 = arith.addf %124, %125 : vector<8x1xf32>
    %127 = math.rsqrt %126 : vector<8x1xf32>
    %128 = vector.broadcast %127 : vector<8x1xf32> to vector<8x32xf32>
    %129 = arith.mulf %119, %128 : vector<8x32xf32>
    %130 = vector.broadcast %111 : vector<1x32xf32> to vector<8x32xf32>
    %131 = arith.mulf %129, %130 : vector<8x32xf32>
    %132 = vector.broadcast %113 : vector<1x32xf32> to vector<8x32xf32>
    %133 = arith.addf %131, %132 : vector<8x32xf32>
    %134 = arith.truncf %133 : vector<8x32xf32> to vector<8x32xbf16>
    %c0_53 = arith.constant 0 : index
    %c0_54 = arith.constant 0 : index
    %c0_55 = arith.constant 0 : index
    %135 = vector.load %arg13[%c0_53, %c0_54, %c0_55] : memref<1x32x128xbf16, #tpu.memory_space<vmem>>, vector<1x32x128xbf16>
    %136 = vector.shape_cast %135 : vector<1x32x128xbf16> to vector<32x128xbf16>
    %cst_56 = arith.constant dense<0.000000e+00> : vector<8x128xf32>
    %137 = tpu.matmul %134, %136, %cst_56 {dimension_numbers = #tpu.dot_dimension_numbers<[1], [0], [0], [1], [0, 0, 1, 1], [], []>} : vector<8x32xbf16>, vector<32x128xbf16>, vector<8x128xf32> -> vector<8x128xf32>
    %c0_57 = arith.constant 0 : index
    %c0_58 = arith.constant 0 : index
    %c0_59 = arith.constant 0 : index
    %138 = vector.load %arg14[%c0_57, %c0_58, %c0_59] : memref<1x1x128xf32, #tpu.memory_space<vmem>>, vector<1x1x128xf32>
    %139 = vector.shape_cast %138 : vector<1x1x128xf32> to vector<1x128xf32>
    %140 = vector.broadcast %139 : vector<1x128xf32> to vector<8x128xf32>
    %141 = arith.addf %137, %140 : vector<8x128xf32>
    %cst_60 = arith.constant 5.000000e-01 : f32
    %142 = vector.broadcast %cst_60 : f32 to vector<8x128xf32>
    %143 = arith.mulf %142, %141 : vector<8x128xf32>
    %cst_61 = arith.constant 4.471500e-02 : f32
    %144 = vector.broadcast %cst_61 : f32 to vector<8x128xf32>
    %145 = arith.mulf %144, %141 : vector<8x128xf32>
    %146 = arith.mulf %145, %141 : vector<8x128xf32>
    %147 = arith.mulf %146, %141 : vector<8x128xf32>
    %148 = arith.addf %141, %147 : vector<8x128xf32>
    %cst_62 = arith.constant 0.797884583 : f32
    %149 = vector.broadcast %cst_62 : f32 to vector<8x128xf32>
    %150 = arith.mulf %149, %148 : vector<8x128xf32>
    %151 = math.tanh %150 : vector<8x128xf32>
    %cst_63 = arith.constant 1.000000e+00 : f32
    %152 = vector.broadcast %cst_63 : f32 to vector<8x128xf32>
    %153 = arith.addf %152, %151 : vector<8x128xf32>
    %154 = arith.mulf %143, %153 : vector<8x128xf32>
    %155 = arith.truncf %154 : vector<8x128xf32> to vector<8x128xbf16>
    %c0_64 = arith.constant 0 : index
    %c0_65 = arith.constant 0 : index
    %c0_66 = arith.constant 0 : index
    %156 = vector.load %arg15[%c0_64, %c0_65, %c0_66] : memref<1x128x32xbf16, #tpu.memory_space<vmem>>, vector<1x128x32xbf16>
    %157 = vector.shape_cast %156 : vector<1x128x32xbf16> to vector<128x32xbf16>
    %cst_67 = arith.constant dense<0.000000e+00> : vector<8x32xf32>
    %158 = tpu.matmul %155, %157, %cst_67 {dimension_numbers = #tpu.dot_dimension_numbers<[1], [0], [0], [1], [0, 0, 1, 1], [], []>} : vector<8x128xbf16>, vector<128x32xbf16>, vector<8x32xf32> -> vector<8x32xf32>
    %c0_68 = arith.constant 0 : index
    %c0_69 = arith.constant 0 : index
    %c0_70 = arith.constant 0 : index
    %159 = vector.load %arg16[%c0_68, %c0_69, %c0_70] : memref<1x1x32xf32, #tpu.memory_space<vmem>>, vector<1x1x32xf32>
    %160 = vector.shape_cast %159 : vector<1x1x32xf32> to vector<1x32xf32>
    %161 = vector.broadcast %160 : vector<1x32xf32> to vector<8x32xf32>
    %162 = arith.addf %158, %161 : vector<8x32xf32>
    %163 = arith.addf %109, %162 : vector<8x32xf32>
    %c0_71 = arith.constant 0 : index
    %c0_72 = arith.constant 0 : index
    %164 = vector.load %arg19[%c0_71, %c0_72] : memref<8x32xf32, #tpu.memory_space<vmem>>, vector<8x32xf32>
    tpu.vector_store %arg19[%c0_71, %c0_72], %163 {strides = array<i32>} : memref<8x32xf32, #tpu.memory_space<vmem>>, vector<8x32xf32>,
    %c1_i32 = arith.constant 1 : i32
    %165 = arith.cmpi eq, %arg1, %c1_i32 : i32
    %166 = arith.extui %165 : i1 to i32
    %c0_i32_73 = arith.constant 0 : i32
    %167 = arith.cmpi ne, %166, %c0_i32_73 : i32
    scf.if %167 {
      %168 = vector.extract_strided_slice %163 {offsets = [0, 0], sizes = [1, 32], strides = [1, 1]} : vector<8x32xf32> to vector<1x32xf32>
      %169 = arith.truncf %168 : vector<1x32xf32> to vector<1x32xbf16>
      %c0_74 = arith.constant 0 : index
      %c0_75 = arith.constant 0 : index
      %170 = vector.load %arg17[%c0_74, %c0_75] : memref<32x32xbf16, #tpu.memory_space<vmem>>, vector<32x32xbf16>
      %cst_76 = arith.constant dense<0.000000e+00> : vector<1x32xf32>
      %171 = tpu.matmul %169, %170, %cst_76 {dimension_numbers = #tpu.dot_dimension_numbers<[1], [0], [0], [1], [0, 0, 1, 1], [], []>} : vector<1x32xbf16>, vector<32x32xbf16>, vector<1x32xf32> -> vector<1x32xf32>
      %172 = arith.mulf %171, %171 : vector<1x32xf32>
      %cst_77 = arith.constant dense<0.000000e+00> : vector<1xf32>
      %173 = vector.multi_reduction <add>, %172, %cst_77 [1] : vector<1x32xf32> to vector<1xf32>
      %174 = vector.shape_cast %173 : vector<1xf32> to vector<1x1xf32>
      %175 = math.rsqrt %174 : vector<1x1xf32>
      %176 = vector.broadcast %175 : vector<1x1xf32> to vector<1x32xf32>
      %177 = arith.mulf %171, %176 : vector<1x32xf32>
      %c0_78 = arith.constant 0 : index
      %c0_79 = arith.constant 0 : index
      %c0_80 = arith.constant 0 : index
      %178 = vector.load %arg18[%c0_78, %c0_79, %c0_80] : memref<1x1x32xf32, #tpu.memory_space<vmem>>, vector<1x1x32xf32>
      %179 = vector.shape_cast %178 : vector<1x1x32xf32> to vector<1x32xf32>
      %180 = vector.shape_cast %177 : vector<1x32xf32> to vector<1x1x32xf32>
      tpu.vector_store %arg18[%c0_78, %c0_79, %c0_80], %180 {strides = array<i32>} : memref<1x1x32xf32, #tpu.memory_space<vmem>>, vector<1x1x32xf32>,
    } else {
    }
    return
  }
  func.func @transform_0(%arg0: i32, %arg1: i32) -> (i32, i32) {
    %c0_i32 = arith.constant 0 : i32
    %c0_i32_0 = arith.constant 0 : i32
    return %arg0, %c0_i32 : i32, i32
  }
  func.func @transform_1(%arg0: i32, %arg1: i32) -> (i32, i32) {
    %c0_i32 = arith.constant 0 : i32
    %c0_i32_0 = arith.constant 0 : i32
    return %arg0, %c0_i32 : i32, i32
  }
  func.func @transform_2(%arg0: i32, %arg1: i32) -> (i32, i32) {
    %c0_i32 = arith.constant 0 : i32
    %c0_i32_0 = arith.constant 0 : i32
    %c0_i32_1 = arith.constant 0 : i32
    return %c0_i32, %c0_i32_0 : i32, i32
  }
  func.func @transform_3(%arg0: i32, %arg1: i32) -> (i32, i32, i32) {
    %c0_i32 = arith.constant 0 : i32
    %c0_i32_0 = arith.constant 0 : i32
    %c0_i32_1 = arith.constant 0 : i32
    return %arg1, %c0_i32, %c0_i32_0 : i32, i32, i32
  }
  func.func @transform_4(%arg0: i32, %arg1: i32) -> (i32, i32, i32) {
    %c0_i32 = arith.constant 0 : i32
    %c0_i32_0 = arith.constant 0 : i32
    %c0_i32_1 = arith.constant 0 : i32
    return %arg1, %c0_i32, %c0_i32_0 : i32, i32, i32
  }
  func.func @transform_5(%arg0: i32, %arg1: i32) -> (i32, i32, i32) {
    %c0_i32 = arith.constant 0 : i32
    %c0_i32_0 = arith.constant 0 : i32
    %c0_i32_1 = arith.constant 0 : i32
    return %arg1, %c0_i32, %c0_i32_0 : i32, i32, i32
  }
  func.func @transform_6(%arg0: i32, %arg1: i32) -> (i32, i32, i32) {
    %c0_i32 = arith.constant 0 : i32
    %c0_i32_0 = arith.constant 0 : i32
    %c0_i32_1 = arith.constant 0 : i32
    return %arg1, %c0_i32, %c0_i32_0 : i32, i32, i32
  }
  func.func @transform_7(%arg0: i32, %arg1: i32) -> (i32, i32, i32) {
    %c0_i32 = arith.constant 0 : i32
    %c0_i32_0 = arith.constant 0 : i32
    %c0_i32_1 = arith.constant 0 : i32
    return %arg1, %c0_i32, %c0_i32_0 : i32, i32, i32
  }
  func.func @transform_8(%arg0: i32, %arg1: i32) -> (i32, i32, i32) {
    %c0_i32 = arith.constant 0 : i32
    %c0_i32_0 = arith.constant 0 : i32
    %c0_i32_1 = arith.constant 0 : i32
    return %arg1, %c0_i32, %c0_i32_0 : i32, i32, i32
  }
  func.func @transform_9(%arg0: i32, %arg1: i32) -> (i32, i32, i32) {
    %c0_i32 = arith.constant 0 : i32
    %c0_i32_0 = arith.constant 0 : i32
    %c0_i32_1 = arith.constant 0 : i32
    return %arg1, %c0_i32, %c0_i32_0 : i32, i32, i32
  }
  func.func @transform_10(%arg0: i32, %arg1: i32) -> (i32, i32, i32) {
    %c0_i32 = arith.constant 0 : i32
    %c0_i32_0 = arith.constant 0 : i32
    %c0_i32_1 = arith.constant 0 : i32
    return %arg1, %c0_i32, %c0_i32_0 : i32, i32, i32
  }
  func.func @transform_11(%arg0: i32, %arg1: i32) -> (i32, i32, i32) {
    %c0_i32 = arith.constant 0 : i32
    %c0_i32_0 = arith.constant 0 : i32
    %c0_i32_1 = arith.constant 0 : i32
    return %arg1, %c0_i32, %c0_i32_0 : i32, i32, i32
  }
  func.func @transform_12(%arg0: i32, %arg1: i32) -> (i32, i32, i32) {
    %c0_i32 = arith.constant 0 : i32
    %c0_i32_0 = arith.constant 0 : i32
    %c0_i32_1 = arith.constant 0 : i32
    return %arg1, %c0_i32, %c0_i32_0 : i32, i32, i32
  }
  func.func @transform_13(%arg0: i32, %arg1: i32) -> (i32, i32, i32) {
    %c0_i32 = arith.constant 0 : i32
    %c0_i32_0 = arith.constant 0 : i32
    %c0_i32_1 = arith.constant 0 : i32
    return %arg1, %c0_i32, %c0_i32_0 : i32, i32, i32
  }
  func.func @transform_14(%arg0: i32, %arg1: i32) -> (i32, i32, i32) {
    %c0_i32 = arith.constant 0 : i32
    %c0_i32_0 = arith.constant 0 : i32
    %c0_i32_1 = arith.constant 0 : i32
    return %arg1, %c0_i32, %c0_i32_0 : i32, i32, i32
  }
  func.func @transform_15(%arg0: i32, %arg1: i32) -> (i32, i32) {
    %c0_i32 = arith.constant 0 : i32
    %c0_i32_0 = arith.constant 0 : i32
    %c0_i32_1 = arith.constant 0 : i32
    return %c0_i32, %c0_i32_0 : i32, i32
  }
  func.func @transform_16(%arg0: i32, %arg1: i32) -> (i32, i32, i32) {
    %c0_i32 = arith.constant 0 : i32
    %c0_i32_0 = arith.constant 0 : i32
    %c0_i32_1 = arith.constant 0 : i32
    return %arg0, %c0_i32, %c0_i32_0 : i32, i32, i32
  }
}

</mosaic_0001>

<llo_original>
// kernel: image_encoder_forward.1
$region0: #{image_encoder_forward.1}
  #allocation0 [shape = 'u32[]', space=smem, size = 0x4, offset = 0x4, fixed_abs, tag = 'smem constant byte address 0x4 - core index']
  #allocation1 [shape = 'u32[72,128]{1,0:T(1,128)}', space=vmem, size = 0x9000, scoped, tag = 'internal scratch']
  #allocation2 [shape = 'f32[8,32]{1,0:T(8,128)}', space=vmem, size = 0x1000, scoped, tag = 'scratch operand']
  #allocation3 [shape = 'f32[8,32]{1,0:T(8,128)}', space=vmem, size = 0x1000, scoped, tag = 'scratch operand']
  %s0 = inlined_call_operand.vmem [shape: f32[16,256], index: 0, kind: input, shape index: {}]
  %s1 = inlined_call_operand.vmem [shape: f32[16,32], index: 1, kind: input, shape index: {}]
  %s2 = inlined_call_operand.vmem [shape: bf16[256,32], index: 2, kind: input, shape index: {}]
  %s3 = inlined_call_operand.vmem [shape: f32[2,1,32], index: 3, kind: input, shape index: {}]
  %s4 = inlined_call_operand.vmem [shape: f32[2,1,32], index: 4, kind: input, shape index: {}]
  %s5 = inlined_call_operand.vmem [shape: bf16[2,32,96], index: 5, kind: input, shape index: {}]
  %s6 = inlined_call_operand.vmem [shape: f32[2,1,96], index: 6, kind: input, shape index: {}]
  %s7 = inlined_call_operand.vmem [shape: bf16[2,32,32], index: 7, kind: input, shape index: {}]
  %s8 = inlined_call_operand.vmem [shape: f32[2,1,32], index: 8, kind: input, shape index: {}]
  %s9 = inlined_call_operand.vmem [shape: f32[2,1,32], index: 9, kind: input, shape index: {}]
  %s10 = inlined_call_operand.vmem [shape: f32[2,1,32], index: 10, kind: input, shape index: {}]
  %s11 = inlined_call_operand.vmem [shape: bf16[2,32,128], index: 11, kind: input, shape index: {}]
  %s12 = inlined_call_operand.vmem [shape: f32[2,1,128], index: 12, kind: input, shape index: {}]
  %s13 = inlined_call_operand.vmem [shape: bf16[2,128,32], index: 13, kind: input, shape index: {}]
  %s14 = inlined_call_operand.vmem [shape: f32[2,1,32], index: 14, kind: input, shape index: {}]
  %s15 = inlined_call_operand.vmem [shape: bf16[32,32], index: 15, kind: input, shape index: {}]
  %s16 = inlined_call_operand.hbm [shape: f32[2,1,32], index: 16, kind: output, shape index: {}]
  %s17 = sld [smem:[#allocation0]]
  $region105: #{image_encoder_forward.1} parent=0
    _
  %s19 = ssub.s32 1, %s17
  %s20 = scalar_select 0, %s19, %s17
  $region1: #{image_encoder_forward.1} parent=0
    #allocation4 [shape = 'u8[1024]{0}', space=vmem, size = 0x400, scoped, tag = 'output window, operand 0']
    #allocation5 [shape = 's32[2]{0}', space=sflag, size = 0x8, scoped, tag = 'scoped memory for image_encoder_forward.1']
    %21 = vsyncpa [#allocation5], 0
    %s22 = scalar_lea.sflag [#allocation5], 1
    %23 = vsyncpa %s22, 0
    loop: start=0, step=1, limit=6
    $region2: #{image_encoder_forward.1} parent=1 // loop_pre_header
      _
    $region3: #{image_encoder_forward.1} parent=1 // loop_header
      %s25 = sphi 0, %s29
      %p26 = scmp.ge.s32.totalorder %s25, 6
      %s32 = sphi 0, %s44
      %s33 = sphi 0, %s40
      %s34 = sphi 0, %s32
      %s35 = sphi 0, %s33
      %s36 = sphi 0, %s34
      %s37 = sphi 0, %s35
      %s47 = sphi 0, %s49
      %s50 = sphi 0, %s47
      %s51 = sphi 0, %s50
      %s67 = sphi 0, %s51
      %s73 = sphi 0, %s75
      %s76 = sphi 0, %s73
      %s77 = sphi 0, %s76
      %s93 = sphi 0, %s77
      %s97 = sphi 0, %s97
      %s99 = sphi 0, %s97
      %s100 = sphi 0, %s99
      %s114 = sphi 0, %s100
      %s120 = sphi 0, %s122
      %s123 = sphi 0, %s120
      %s124 = sphi 0, %s123
      %s140 = sphi 0, %s124
      %s146 = sphi 0, %s148
      %s149 = sphi 0, %s146
      %s150 = sphi 0, %s149
      %s166 = sphi 0, %s150
      %s172 = sphi 0, %s174
      %s175 = sphi 0, %s172
      %s176 = sphi 0, %s175
      %s192 = sphi 0, %s176
      %s198 = sphi 0, %s200
      %s201 = sphi 0, %s198
      %s202 = sphi 0, %s201
      %s218 = sphi 0, %s202
      %s224 = sphi 0, %s226
      %s227 = sphi 0, %s224
      %s228 = sphi 0, %s227
      %s244 = sphi 0, %s228
      %s250 = sphi 0, %s252
      %s253 = sphi 0, %s250
      %s254 = sphi 0, %s253
      %s270 = sphi 0, %s254
      %s276 = sphi 0, %s278
      %s279 = sphi 0, %s276
      %s280 = sphi 0, %s279
      %s296 = sphi 0, %s280
      %s302 = sphi 0, %s304
      %s305 = sphi 0, %s302
      %s306 = sphi 0, %s305
      %s322 = sphi 0, %s306
      %s328 = sphi 0, %s330
      %s331 = sphi 0, %s328
      %s332 = sphi 0, %s331
      %s348 = sphi 0, %s332
      %s354 = sphi 0, %s356
      %s357 = sphi 0, %s354
      %s358 = sphi 0, %s357
      %s374 = sphi 0, %s358
      %s380 = sphi 0, %s382
      %s383 = sphi 0, %s380
      %s384 = sphi 0, %s383
      %s400 = sphi 0, %s384
      %s406 = sphi 0, %s408
      %s409 = sphi 0, %s406
      %s410 = sphi 0, %s409
      %s426 = sphi 0, %s410
      %s430 = sphi 0, %s430
      %s432 = sphi 0, %s430
      %s433 = sphi 0, %s432
      %s447 = sphi 0, %s433
      %s453 = sphi 0, %s455
      %s456 = sphi 0, %s453
      %s457 = sphi 0, %s456
      %s473 = sphi 0, %s457
    $region4: #{image_encoder_forward.1} parent=1 // loop_header_branch
      %28 = sbr.rel (%p26) target = $region8
    $region5: #{image_encoder_forward.1} parent=1 // loop_body
      %s30 = ssub.s32 %s25, 1
      %s31 = ssub.s32 %s25, 2
      %s38 = sadd.s32 1, %s33
      %p39 = scmp.ge.s32.totalorder %s38, 2
      %s40 = scalar_select %p39, 0, %s38
      %s41 = sadd.s32 1, %s32
      %s42 = scalar_select %p39, %s41, %s32
      %p43 = scmp.ge.s32.totalorder %s42, 2
      %s44 = scalar_select %p43, 0, %s42
      %s45 = ssub.s32 %s32, %s44
      %p46 = scmp.eq.s32.totalorder %s45, 0
      %s48 = sadd.s32 %s47, 1
      %s49 = scalar_select %p46, %s47, %s48
      %p52 = pneg %p46
      %p53 = scmp.eq.s32.totalorder %s25, 3
      %p54 = por %p52, %p53
      %p55 = scmp.ne.s32.totalorder %s47, %s50
      %p56 = scmp.eq.s32.totalorder %s25, 0
      %p57 = por %p55, %p56
      %p58 = scmp.ne.s32.totalorder %s47, %s50
      %p59 = scmp.eq.s32.totalorder %s30, 3
      %p60 = por %p58, %p59
      %p61 = scmp.ne.s32.totalorder %s50, %s51
      %p62 = scmp.eq.s32.totalorder %s30, 0
      %p63 = por %p61, %p62
      %p64 = scmp.ne.s32.totalorder %s50, %s51
      %p65 = scmp.eq.s32.totalorder %s31, 3
      %p66 = por %p64, %p65
      %p68 = scmp.ne.s32.totalorder %s51, %s67
      %p69 = scmp.eq.s32.totalorder %s31, 0
      %p70 = por %p68, %p69
      %s71 = ssub.s32 %s32, %s44
      %p72 = scmp.eq.s32.totalorder %s71, 0
      %s74 = sadd.s32 %s73, 1
      %s75 = scalar_select %p72, %s73, %s74
      %p78 = pneg %p72
      %p79 = scmp.eq.s32.totalorder %s25, 3
      %p80 = por %p78, %p79
      %p81 = scmp.ne.s32.totalorder %s73, %s76
      %p82 = scmp.eq.s32.totalorder %s25, 0
      %p83 = por %p81, %p82
      %p84 = scmp.ne.s32.totalorder %s73, %s76
      %p85 = scmp.eq.s32.totalorder %s30, 3
      %p86 = por %p84, %p85
      %p87 = scmp.ne.s32.totalorder %s76, %s77
      %p88 = scmp.eq.s32.totalorder %s30, 0
      %p89 = por %p87, %p88
      %p90 = scmp.ne.s32.totalorder %s76, %s77
      %p91 = scmp.eq.s32.totalorder %s31, 3
      %p92 = por %p90, %p91
      %p94 = scmp.ne.s32.totalorder %s77, %s93
      %p95 = scmp.eq.s32.totalorder %s31, 0
      %p96 = por %p94, %p95
      %s98 = sadd.s32 %s97, 1
      %p101 = scmp.eq.s32.totalorder %s25, 3
      %p102 = scmp.ne.s32.totalorder %s97, %s99
      %p103 = scmp.eq.s32.totalorder %s25, 0
      %p104 = por %p102, %p103
      %p105 = scmp.ne.s32.totalorder %s97, %s99
      %p106 = scmp.eq.s32.totalorder %s30, 3
      %p107 = por %p105, %p106
      %p108 = scmp.ne.s32.totalorder %s99, %s100
      %p109 = scmp.eq.s32.totalorder %s30, 0
      %p110 = por %p108, %p109
      %p111 = scmp.ne.s32.totalorder %s99, %s100
      %p112 = scmp.eq.s32.totalorder %s31, 3
      %p113 = por %p111, %p112
      %p115 = scmp.ne.s32.totalorder %s100, %s114
      %p116 = scmp.eq.s32.totalorder %s31, 0
      %p117 = por %p115, %p116
      %s118 = ssub.s32 %s33, %s40
      %p119 = scmp.eq.s32.totalorder %s118, 0
      %s121 = sadd.s32 %s120, 1
      %s122 = scalar_select %p119, %s120, %s121
      %p125 = pneg %p119
      %p126 = scmp.eq.s32.totalorder %s25, 3
      %p127 = por %p125, %p126
      %p128 = scmp.ne.s32.totalorder %s120, %s123
      %p129 = scmp.eq.s32.totalorder %s25, 0
      %p130 = por %p128, %p129
      %p131 = scmp.ne.s32.totalorder %s120, %s123
      %p132 = scmp.eq.s32.totalorder %s30, 3
      %p133 = por %p131, %p132
      %p134 = scmp.ne.s32.totalorder %s123, %s124
      %p135 = scmp.eq.s32.totalorder %s30, 0
      %p136 = por %p134, %p135
      %p137 = scmp.ne.s32.totalorder %s123, %s124
      %p138 = scmp.eq.s32.totalorder %s31, 3
      %p139 = por %p137, %p138
      %p141 = scmp.ne.s32.totalorder %s124, %s140
      %p142 = scmp.eq.s32.totalorder %s31, 0
      %p143 = por %p141, %p142
      %s144 = ssub.s32 %s33, %s40
      %p145 = scmp.eq.s32.totalorder %s144, 0
      %s147 = sadd.s32 %s146, 1
      %s148 = scalar_select %p145, %s146, %s147
      %p151 = pneg %p145
      %p152 = scmp.eq.s32.totalorder %s25, 3
      %p153 = por %p151, %p152
      %p154 = scmp.ne.s32.totalorder %s146, %s149
      %p155 = scmp.eq.s32.totalorder %s25, 0
      %p156 = por %p154, %p155
      %p157 = scmp.ne.s32.totalorder %s146, %s149
      %p158 = scmp.eq.s32.totalorder %s30, 3
      %p159 = por %p157, %p158
      %p160 = scmp.ne.s32.totalorder %s149, %s150
      %p161 = scmp.eq.s32.totalorder %s30, 0
      %p162 = por %p160, %p161
      %p163 = scmp.ne.s32.totalorder %s149, %s150
      %p164 = scmp.eq.s32.totalorder %s31, 3
      %p165 = por %p163, %p164
      %p167 = scmp.ne.s32.totalorder %s150, %s166
      %p168 = scmp.eq.s32.totalorder %s31, 0
      %p169 = por %p167, %p168
      %s170 = ssub.s32 %s33, %s40
      %p171 = scmp.eq.s32.totalorder %s170, 0
      %s173 = sadd.s32 %s172, 1
      %s174 = scalar_select %p171, %s172, %s173
      %p177 = pneg %p171
      %p178 = scmp.eq.s32.totalorder %s25, 3
      %p179 = por %p177, %p178
      %p180 = scmp.ne.s32.totalorder %s172, %s175
      %p181 = scmp.eq.s32.totalorder %s25, 0
      %p182 = por %p180, %p181
      %p183 = scmp.ne.s32.totalorder %s172, %s175
      %p184 = scmp.eq.s32.totalorder %s30, 3
      %p185 = por %p183, %p184
      %p186 = scmp.ne.s32.totalorder %s175, %s176
      %p187 = scmp.eq.s32.totalorder %s30, 0
      %p188 = por %p186, %p187
      %p189 = scmp.ne.s32.totalorder %s175, %s176
      %p190 = scmp.eq.s32.totalorder %s31, 3
      %p191 = por %p189, %p190
      %p193 = scmp.ne.s32.totalorder %s176, %s192
      %p194 = scmp.eq.s32.totalorder %s31, 0
      %p195 = por %p193, %p194
      %s196 = ssub.s32 %s33, %s40
      %p197 = scmp.eq.s32.totalorder %s196, 0
      %s199 = sadd.s32 %s198, 1
      %s200 = scalar_select %p197, %s198, %s199
      %p203 = pneg %p197
      %p204 = scmp.eq.s32.totalorder %s25, 3
      %p205 = por %p203, %p204
      %p206 = scmp.ne.s32.totalorder %s198, %s201
      %p207 = scmp.eq.s32.totalorder %s25, 0
      %p208 = por %p206, %p207
      %p209 = scmp.ne.s32.totalorder %s198, %s201
      %p210 = scmp.eq.s32.totalorder %s30, 3
      %p211 = por %p209, %p210
      %p212 = scmp.ne.s32.totalorder %s201, %s202
      %p213 = scmp.eq.s32.totalorder %s30, 0
      %p214 = por %p212, %p213
      %p215 = scmp.ne.s32.totalorder %s201, %s202
      %p216 = scmp.eq.s32.totalorder %s31, 3
      %p217 = por %p215, %p216
      %p219 = scmp.ne.s32.totalorder %s202, %s218
      %p220 = scmp.eq.s32.totalorder %s31, 0
      %p221 = por %p219, %p220
      %s222 = ssub.s32 %s33, %s40
      %p223 = scmp.eq.s32.totalorder %s222, 0
      %s225 = sadd.s32 %s224, 1
      %s226 = scalar_select %p223, %s224, %s225
      %p229 = pneg %p223
      %p230 = scmp.eq.s32.totalorder %s25, 3
      %p231 = por %p229, %p230
      %p232 = scmp.ne.s32.totalorder %s224, %s227
      %p233 = scmp.eq.s32.totalorder %s25, 0
      %p234 = por %p232, %p233
      %p235 = scmp.ne.s32.totalorder %s224, %s227
      %p236 = scmp.eq.s32.totalorder %s30, 3
      %p237 = por %p235, %p236
      %p238 = scmp.ne.s32.totalorder %s227, %s228
      %p239 = scmp.eq.s32.totalorder %s30, 0
      %p240 = por %p238, %p239
      %p241 = scmp.ne.s32.totalorder %s227, %s228
      %p242 = scmp.eq.s32.totalorder %s31, 3
      %p243 = por %p241, %p242
      %p245 = scmp.ne.s32.totalorder %s228, %s244
      %p246 = scmp.eq.s32.totalorder %s31, 0
      %p247 = por %p245, %p246
      %s248 = ssub.s32 %s33, %s40
      %p249 = scmp.eq.s32.totalorder %s248, 0
      %s251 = sadd.s32 %s250, 1
      %s252 = scalar_select %p249, %s250, %s251
      %p255 = pneg %p249
      %p256 = scmp.eq.s32.totalorder %s25, 3
      %p257 = por %p255, %p256
      %p258 = scmp.ne.s32.totalorder %s250, %s253
      %p259 = scmp.eq.s32.totalorder %s25, 0
      %p260 = por %p258, %p259
      %p261 = scmp.ne.s32.totalorder %s250, %s253
      %p262 = scmp.eq.s32.totalorder %s30, 3
      %p263 = por %p261, %p262
      %p264 = scmp.ne.s32.totalorder %s253, %s254
      %p265 = scmp.eq.s32.totalorder %s30, 0
      %p266 = por %p264, %p265
      %p267 = scmp.ne.s32.totalorder %s253, %s254
      %p268 = scmp.eq.s32.totalorder %s31, 3
      %p269 = por %p267, %p268
      %p271 = scmp.ne.s32.totalorder %s254, %s270
      %p272 = scmp.eq.s32.totalorder %s31, 0
      %p273 = por %p271, %p272
      %s274 = ssub.s32 %s33, %s40
      %p275 = scmp.eq.s32.totalorder %s274, 0
      %s277 = sadd.s32 %s276, 1
      %s278 = scalar_select %p275, %s276, %s277
      %p281 = pneg %p275
      %p282 = scmp.eq.s32.totalorder %s25, 3
      %p283 = por %p281, %p282
      %p284 = scmp.ne.s32.totalorder %s276, %s279
      %p285 = scmp.eq.s32.totalorder %s25, 0
      %p286 = por %p284, %p285
      %p287 = scmp.ne.s32.totalorder %s276, %s279
      %p288 = scmp.eq.s32.totalorder %s30, 3
      %p289 = por %p287, %p288
      %p290 = scmp.ne.s32.totalorder %s279, %s280
      %p291 = scmp.eq.s32.totalorder %s30, 0
      %p292 = por %p290, %p291
      %p293 = scmp.ne.s32.totalorder %s279, %s280
      %p294 = scmp.eq.s32.totalorder %s31, 3
      %p295 = por %p293, %p294
      %p297 = scmp.ne.s32.totalorder %s280, %s296
      %p298 = scmp.eq.s32.totalorder %s31, 0
      %p299 = por %p297, %p298
      %s300 = ssub.s32 %s33, %s40
      %p301 = scmp.eq.s32.totalorder %s300, 0
      %s303 = sadd.s32 %s302, 1
      %s304 = scalar_select %p301, %s302, %s303
      %p307 = pneg %p301
      %p308 = scmp.eq.s32.totalorder %s25, 3
      %p309 = por %p307, %p308
      %p310 = scmp.ne.s32.totalorder %s302, %s305
      %p311 = scmp.eq.s32.totalorder %s25, 0
      %p312 = por %p310, %p311
      %p313 = scmp.ne.s32.totalorder %s302, %s305
      %p314 = scmp.eq.s32.totalorder %s30, 3
      %p315 = por %p313, %p314
      %p316 = scmp.ne.s32.totalorder %s305, %s306
      %p317 = scmp.eq.s32.totalorder %s30, 0
      %p318 = por %p316, %p317
      %p319 = scmp.ne.s32.totalorder %s305, %s306
      %p320 = scmp.eq.s32.totalorder %s31, 3
      %p321 = por %p319, %p320
      %p323 = scmp.ne.s32.totalorder %s306, %s322
      %p324 = scmp.eq.s32.totalorder %s31, 0
      %p325 = por %p323, %p324
      %s326 = ssub.s32 %s33, %s40
      %p327 = scmp.eq.s32.totalorder %s326, 0
      %s329 = sadd.s32 %s328, 1
      %s330 = scalar_select %p327, %s328, %s329
      %p333 = pneg %p327
      %p334 = scmp.eq.s32.totalorder %s25, 3
      %p335 = por %p333, %p334
      %p336 = scmp.ne.s32.totalorder %s328, %s331
      %p337 = scmp.eq.s32.totalorder %s25, 0
      %p338 = por %p336, %p337
      %p339 = scmp.ne.s32.totalorder %s328, %s331
      %p340 = scmp.eq.s32.totalorder %s30, 3
      %p341 = por %p339, %p340
      %p342 = scmp.ne.s32.totalorder %s331, %s332
      %p343 = scmp.eq.s32.totalorder %s30, 0
      %p344 = por %p342, %p343
      %p345 = scmp.ne.s32.totalorder %s331, %s332
      %p346 = scmp.eq.s32.totalorder %s31, 3
      %p347 = por %p345, %p346
      %p349 = scmp.ne.s32.totalorder %s332, %s348
      %p350 = scmp.eq.s32.totalorder %s31, 0
      %p351 = por %p349, %p350
      %s352 = ssub.s32 %s33, %s40
      %p353 = scmp.eq.s32.totalorder %s352, 0
      %s355 = sadd.s32 %s354, 1
      %s356 = scalar_select %p353, %s354, %s355
      %p359 = pneg %p353
      %p360 = scmp.eq.s32.totalorder %s25, 3
      %p361 = por %p359, %p360
      %p362 = scmp.ne.s32.totalorder %s354, %s357
      %p363 = scmp.eq.s32.totalorder %s25, 0
      %p364 = por %p362, %p363
      %p365 = scmp.ne.s32.totalorder %s354, %s357
      %p366 = scmp.eq.s32.totalorder %s30, 3
      %p367 = por %p365, %p366
      %p368 = scmp.ne.s32.totalorder %s357, %s358
      %p369 = scmp.eq.s32.totalorder %s30, 0
      %p370 = por %p368, %p369
      %p371 = scmp.ne.s32.totalorder %s357, %s358
      %p372 = scmp.eq.s32.totalorder %s31, 3
      %p373 = por %p371, %p372
      %p375 = scmp.ne.s32.totalorder %s358, %s374
      %p376 = scmp.eq.s32.totalorder %s31, 0
      %p377 = por %p375, %p376
      %s378 = ssub.s32 %s33, %s40
      %p379 = scmp.eq.s32.totalorder %s378, 0
      %s381 = sadd.s32 %s380, 1
      %s382 = scalar_select %p379, %s380, %s381
      %p385 = pneg %p379
      %p386 = scmp.eq.s32.totalorder %s25, 3
      %p387 = por %p385, %p386
      %p388 = scmp.ne.s32.totalorder %s380, %s383
      %p389 = scmp.eq.s32.totalorder %s25, 0
      %p390 = por %p388, %p389
      %p391 = scmp.ne.s32.totalorder %s380, %s383
      %p392 = scmp.eq.s32.totalorder %s30, 3
      %p393 = por %p391, %p392
      %p394 = scmp.ne.s32.totalorder %s383, %s384
      %p395 = scmp.eq.s32.totalorder %s30, 0
      %p396 = por %p394, %p395
      %p397 = scmp.ne.s32.totalorder %s383, %s384
      %p398 = scmp.eq.s32.totalorder %s31, 3
      %p399 = por %p397, %p398
      %p401 = scmp.ne.s32.totalorder %s384, %s400
      %p402 = scmp.eq.s32.totalorder %s31, 0
      %p403 = por %p401, %p402
      %s404 = ssub.s32 %s33, %s40
      %p405 = scmp.eq.s32.totalorder %s404, 0
      %s407 = sadd.s32 %s406, 1
      %s408 = scalar_select %p405, %s406, %s407
      %p411 = pneg %p405
      %p412 = scmp.eq.s32.totalorder %s25, 3
      %p413 = por %p411, %p412
      %p414 = scmp.ne.s32.totalorder %s406, %s409
      %p415 = scmp.eq.s32.totalorder %s25, 0
      %p416 = por %p414, %p415
      %p417 = scmp.ne.s32.totalorder %s406, %s409
      %p418 = scmp.eq.s32.totalorder %s30, 3
      %p419 = por %p417, %p418
      %p420 = scmp.ne.s32.totalorder %s409, %s410
      %p421 = scmp.eq.s32.totalorder %s30, 0
      %p422 = por %p420, %p421
      %p423 = scmp.ne.s32.totalorder %s409, %s410
      %p424 = scmp.eq.s32.totalorder %s31, 3
      %p425 = por %p423, %p424
      %p427 = scmp.ne.s32.totalorder %s410, %s426
      %p428 = scmp.eq.s32.totalorder %s31, 0
      %p429 = por %p427, %p428
      %s431 = sadd.s32 %s430, 1
      %p434 = scmp.eq.s32.totalorder %s25, 3
      %p435 = scmp.ne.s32.totalorder %s430, %s432
      %p436 = scmp.eq.s32.totalorder %s25, 0
      %p437 = por %p435, %p436
      %p438 = scmp.ne.s32.totalorder %s430, %s432
      %p439 = scmp.eq.s32.totalorder %s30, 3
      %p440 = por %p438, %p439
      %p441 = scmp.ne.s32.totalorder %s432, %s433
      %p442 = scmp.eq.s32.totalorder %s30, 0
      %p443 = por %p441, %p442
      %p444 = scmp.ne.s32.totalorder %s432, %s433
      %p445 = scmp.eq.s32.totalorder %s31, 3
      %p446 = por %p444, %p445
      %p448 = scmp.ne.s32.totalorder %s433, %s447
      %p449 = scmp.eq.s32.totalorder %s31, 0
      %p450 = por %p448, %p449
      %s451 = ssub.s32 %s32, %s44
      %p452 = scmp.eq.s32.totalorder %s451, 0
      %s454 = sadd.s32 %s453, 1
      %s455 = scalar_select %p452, %s453, %s454
      %p458 = pneg %p452
      %p459 = scmp.eq.s32.totalorder %s25, 3
      %p460 = por %p458, %p459
      %p461 = scmp.ne.s32.totalorder %s453, %s456
      %p462 = scmp.eq.s32.totalorder %s25, 0
      %p463 = por %p461, %p462
      %p464 = scmp.ne.s32.totalorder %s453, %s456
      %p465 = scmp.eq.s32.totalorder %s30, 3
      %p466 = por %p464, %p465
      %p467 = scmp.ne.s32.totalorder %s456, %s457
      %p468 = scmp.eq.s32.totalorder %s30, 0
      %p469 = por %p467, %p468
      %p470 = scmp.ne.s32.totalorder %s456, %s457
      %p471 = scmp.eq.s32.totalorder %s31, 3
      %p472 = por %p470, %p471
      %p474 = scmp.ne.s32.totalorder %s457, %s473
      %p475 = scmp.eq.s32.totalorder %s31, 0
      %p476 = por %p474, %p475
      %p477 = scmp.le.s32.totalorder 1, %s25
      %p478 = scmp.lt.s32.totalorder %s25, 5
      %p479 = pnand %p477, %p478
      %p480 = pneg %p479
      // Predicated region
      $region9: #{image_encoder_forward.1} parent=5 // pred_check
        _
      $region10: #{image_encoder_forward.1} parent=5 // pred_check_branch
        %482 = sbr.rel (%p479) target = $region12
      $region11: #{image_encoder_forward.1} parent=5 // pred_region
        %s483 = ssub.s32 %s25, 1
        // Predicated region
        $region13: #{image_encoder_forward.1} parent=11 // pred_check
          %p484 = pneg %p110
        $region14: #{image_encoder_forward.1} parent=11 // pred_check_branch
          %486 = sbr.rel (%p484) target = $region16
        $region15: #{image_encoder_forward.1} parent=11 // pred_region
          _
        $region16: #{image_encoder_forward.1} parent=11 // pred_fallthru
          _
        // Predicated region
        $region17: #{image_encoder_forward.1} parent=11 // pred_check
          %p487 = pneg %p443
        $region18: #{image_encoder_forward.1} parent=11 // pred_check_branch
          %489 = sbr.rel (%p487) target = $region20
        $region19: #{image_encoder_forward.1} parent=11 // pred_region
          _
        $region20: #{image_encoder_forward.1} parent=11 // pred_fallthru
          _
      $region12: #{image_encoder_forward.1} parent=5 // pred_fallthru
        _
      %p490 = scmp.lt.s32.totalorder %s25, 4
      // Predicated region
      $region21: #{image_encoder_forward.1} parent=5 // pred_check
        %p491 = pneg %p490
      $region22: #{image_encoder_forward.1} parent=5 // pred_check_branch
        %493 = sbr.rel (%p491) target = $region24
      $region23: #{image_encoder_forward.1} parent=5 // pred_region
        // Predicated region
        $region25: #{image_encoder_forward.1} parent=23 // pred_check
          %p494 = pneg %p57
        $region26: #{image_encoder_forward.1} parent=23 // pred_check_branch
          %496 = sbr.rel (%p494) target = $region28
        $region27: #{image_encoder_forward.1} parent=23 // pred_region
          %p497 = scmp.lt.s32.totalorder %s32, 1
          %s498 = scalar_select %p497, %s32, 1
          %s499 = smul.addr %s498, 2
          %s500 = smul.addr %s499, 8
          %s501 = scalar_lea.vmem %s0, %s500
        $region28: #{image_encoder_forward.1} parent=23 // pred_fallthru
          _
        // Predicated region
        $region29: #{image_encoder_forward.1} parent=23 // pred_check
          %p502 = pneg %p83
        $region30: #{image_encoder_forward.1} parent=23 // pred_check_branch
          %504 = sbr.rel (%p502) target = $region32
        $region31: #{image_encoder_forward.1} parent=23 // pred_region
          %p505 = scmp.lt.s32.totalorder %s32, 1
          %s506 = scalar_select %p505, %s32, 1
          %s507 = smul.addr %s506, 8
          %s508 = scalar_lea.vmem %s1, %s507
        $region32: #{image_encoder_forward.1} parent=23 // pred_fallthru
          _
        // Predicated region
        $region33: #{image_encoder_forward.1} parent=23 // pred_check
          %p509 = pneg %p130
        $region34: #{image_encoder_forward.1} parent=23 // pred_check_branch
          %511 = sbr.rel (%p509) target = $region36
        $region35: #{image_encoder_forward.1} parent=23 // pred_region
          %p512 = scmp.lt.s32.totalorder %s33, 1
          %s513 = scalar_select %p512, %s33, 1
          %s514 = scalar_lea.vmem %s3, %s513
        $region36: #{image_encoder_forward.1} parent=23 // pred_fallthru
          _
        // Predicated region
        $region37: #{image_encoder_forward.1} parent=23 // pred_check
          %p515 = pneg %p156
        $region38: #{image_encoder_forward.1} parent=23 // pred_check_branch
          %517 = sbr.rel (%p515) target = $region40
        $region39: #{image_encoder_forward.1} parent=23 // pred_region
          %p518 = scmp.lt.s32.totalorder %s33, 1
          %s519 = scalar_select %p518, %s33, 1
          %s520 = scalar_lea.vmem %s4, %s519
        $region40: #{image_encoder_forward.1} parent=23 // pred_fallthru
          _
        // Predicated region
        $region41: #{image_encoder_forward.1} parent=23 // pred_check
          %p521 = pneg %p182
        $region42: #{image_encoder_forward.1} parent=23 // pred_check_branch
          %523 = sbr.rel (%p521) target = $region44
        $region43: #{image_encoder_forward.1} parent=23 // pred_region
          %p524 = scmp.lt.s32.totalorder %s33, 1
          %s525 = scalar_select %p524, %s33, 1
          %s526 = smul.addr %s525, 4
          %s527 = smul.addr %s526, 4
          %s528 = scalar_lea.vmem %s5, %s527
        $region44: #{image_encoder_forward.1} parent=23 // pred_fallthru
          _
        // Predicated region
        $region45: #{image_encoder_forward.1} parent=23 // pred_check
          %p529 = pneg %p208
        $region46: #{image_encoder_forward.1} parent=23 // pred_check_branch
          %531 = sbr.rel (%p529) target = $region48
        $region47: #{image_encoder_forward.1} parent=23 // pred_region
          %p532 = scmp.lt.s32.totalorder %s33, 1
          %s533 = scalar_select %p532, %s33, 1
          %s534 = scalar_lea.vmem %s6, %s533
        $region48: #{image_encoder_forward.1} parent=23 // pred_fallthru
          _
        // Predicated region
        $region49: #{image_encoder_forward.1} parent=23 // pred_check
          %p535 = pneg %p234
        $region50: #{image_encoder_forward.1} parent=23 // pred_check_branch
          %537 = sbr.rel (%p535) target = $region52
        $region51: #{image_encoder_forward.1} parent=23 // pred_region
          %p538 = scmp.lt.s32.totalorder %s33, 1
          %s539 = scalar_select %p538, %s33, 1
          %s540 = smul.addr %s539, 4
          %s541 = smul.addr %s540, 4
          %s542 = scalar_lea.vmem %s7, %s541
        $region52: #{image_encoder_forward.1} parent=23 // pred_fallthru
          _
        // Predicated region
        $region53: #{image_encoder_forward.1} parent=23 // pred_check
          %p543 = pneg %p260
        $region54: #{image_encoder_forward.1} parent=23 // pred_check_branch
          %545 = sbr.rel (%p543) target = $region56
        $region55: #{image_encoder_forward.1} parent=23 // pred_region
          %p546 = scmp.lt.s32.totalorder %s33, 1
          %s547 = scalar_select %p546, %s33, 1
          %s548 = scalar_lea.vmem %s8, %s547
        $region56: #{image_encoder_forward.1} parent=23 // pred_fallthru
          _
        // Predicated region
        $region57: #{image_encoder_forward.1} parent=23 // pred_check
          %p549 = pneg %p286
        $region58: #{image_encoder_forward.1} parent=23 // pred_check_branch
          %551 = sbr.rel (%p549) target = $region60
        $region59: #{image_encoder_forward.1} parent=23 // pred_region
          %p552 = scmp.lt.s32.totalorder %s33, 1
          %s553 = scalar_select %p552, %s33, 1
          %s554 = scalar_lea.vmem %s9, %s553
        $region60: #{image_encoder_forward.1} parent=23 // pred_fallthru
          _
        // Predicated region
        $region61: #{image_encoder_forward.1} parent=23 // pred_check
          %p555 = pneg %p312
        $region62: #{image_encoder_forward.1} parent=23 // pred_check_branch
          %557 = sbr.rel (%p555) target = $region64
        $region63: #{image_encoder_forward.1} parent=23 // pred_region
          %p558 = scmp.lt.s32.totalorder %s33, 1
          %s559 = scalar_select %p558, %s33, 1
          %s560 = scalar_lea.vmem %s10, %s559
        $region64: #{image_encoder_forward.1} parent=23 // pred_fallthru
          _
        // Predicated region
        $region65: #{image_encoder_forward.1} parent=23 // pred_check
          %p561 = pneg %p338
        $region66: #{image_encoder_forward.1} parent=23 // pred_check_branch
          %563 = sbr.rel (%p561) target = $region68
        $region67: #{image_encoder_forward.1} parent=23 // pred_region
          %p564 = scmp.lt.s32.totalorder %s33, 1
          %s565 = scalar_select %p564, %s33, 1
          %s566 = smul.addr %s565, 4
          %s567 = smul.addr %s566, 4
          %s568 = scalar_lea.vmem %s11, %s567
        $region68: #{image_encoder_forward.1} parent=23 // pred_fallthru
          _
        // Predicated region
        $region69: #{image_encoder_forward.1} parent=23 // pred_check
          %p569 = pneg %p364
        $region70: #{image_encoder_forward.1} parent=23 // pred_check_branch
          %571 = sbr.rel (%p569) target = $region72
        $region71: #{image_encoder_forward.1} parent=23 // pred_region
          %p572 = scmp.lt.s32.totalorder %s33, 1
          %s573 = scalar_select %p572, %s33, 1
          %s574 = scalar_lea.vmem %s12, %s573
        $region72: #{image_encoder_forward.1} parent=23 // pred_fallthru
          _
        // Predicated region
        $region73: #{image_encoder_forward.1} parent=23 // pred_check
          %p575 = pneg %p390
        $region74: #{image_encoder_forward.1} parent=23 // pred_check_branch
          %577 = sbr.rel (%p575) target = $region76
        $region75: #{image_encoder_forward.1} parent=23 // pred_region
          %p578 = scmp.lt.s32.totalorder %s33, 1
          %s579 = scalar_select %p578, %s33, 1
          %s580 = smul.addr %s579, 16
          %s581 = smul.addr %s580, 4
          %s582 = scalar_lea.vmem %s13, %s581
        $region76: #{image_encoder_forward.1} parent=23 // pred_fallthru
          _
        // Predicated region
        $region77: #{image_encoder_forward.1} parent=23 // pred_check
          %p583 = pneg %p416
        $region78: #{image_encoder_forward.1} parent=23 // pred_check_branch
          %585 = sbr.rel (%p583) target = $region80
        $region79: #{image_encoder_forward.1} parent=23 // pred_region
          %p586 = scmp.lt.s32.totalorder %s33, 1
          %s587 = scalar_select %p586, %s33, 1
          %s588 = scalar_lea.vmem %s14, %s587
        $region80: #{image_encoder_forward.1} parent=23 // pred_fallthru
          _
      $region24: #{image_encoder_forward.1} parent=5 // pred_fallthru
        _
      %p589 = scmp.le.s32.totalorder 1, %s25
      %p590 = scmp.lt.s32.totalorder %s25, 5
      %p591 = pnand %p589, %p590
      %p592 = pneg %p591
      // Predicated region
      $region81: #{image_encoder_forward.1} parent=5 // pred_check
        _
      $region82: #{image_encoder_forward.1} parent=5 // pred_check_branch
        %594 = sbr.rel (%p591) target = $region84
      $region83: #{image_encoder_forward.1} parent=5 // pred_region
        %s595 = ssub.s32 %s25, 1
        %p596 = scmp.lt.s32.totalorder %s34, 1
        %s597 = scalar_select %p596, %s34, 1
        %s598 = smul.addr %s597, 2
        %s599 = smul.addr %s598, 8
        %s600 = scalar_lea.vmem %s0, %s599
        %p601 = pneg %p63
        %p602 = pneg %p60
        %p603 = scmp.lt.s32.totalorder %s34, 1
        %s604 = scalar_select %p603, %s34, 1
        %s605 = smul.addr %s604, 8
        %s606 = scalar_lea.vmem %s1, %s605
        %p607 = pneg %p89
        %p608 = pneg %p86
        %p609 = pneg %p110
        %p610 = pneg %p107
        %p611 = scmp.lt.s32.totalorder %s35, 1
        %s612 = scalar_select %p611, %s35, 1
        %s613 = scalar_lea.vmem %s3, %s612
        %p614 = pneg %p136
        %p615 = pneg %p133
        %p616 = scmp.lt.s32.totalorder %s35, 1
        %s617 = scalar_select %p616, %s35, 1
        %s618 = scalar_lea.vmem %s4, %s617
        %p619 = pneg %p162
        %p620 = pneg %p159
        %p621 = scmp.lt.s32.totalorder %s35, 1
        %s622 = scalar_select %p621, %s35, 1
        %s623 = smul.addr %s622, 4
        %s624 = smul.addr %s623, 4
        %s625 = scalar_lea.vmem %s5, %s624
        %p626 = pneg %p188
        %p627 = pneg %p185
        %p628 = scmp.lt.s32.totalorder %s35, 1
        %s629 = scalar_select %p628, %s35, 1
        %s630 = scalar_lea.vmem %s6, %s629
        %p631 = pneg %p214
        %p632 = pneg %p211
        %p633 = scmp.lt.s32.totalorder %s35, 1
        %s634 = scalar_select %p633, %s35, 1
        %s635 = smul.addr %s634, 4
        %s636 = smul.addr %s635, 4
        %s637 = scalar_lea.vmem %s7, %s636
        %p638 = pneg %p240
        %p639 = pneg %p237
        %p640 = scmp.lt.s32.totalorder %s35, 1
        %s641 = scalar_select %p640, %s35, 1
        %s642 = scalar_lea.vmem %s8, %s641
        %p643 = pneg %p266
        %p644 = pneg %p263
        %p645 = scmp.lt.s32.totalorder %s35, 1
        %s646 = scalar_select %p645, %s35, 1
        %s647 = scalar_lea.vmem %s9, %s646
        %p648 = pneg %p292
        %p649 = pneg %p289
        %p650 = scmp.lt.s32.totalorder %s35, 1
        %s651 = scalar_select %p650, %s35, 1
        %s652 = scalar_lea.vmem %s10, %s651
        %p653 = pneg %p318
        %p654 = pneg %p315
        %p655 = scmp.lt.s32.totalorder %s35, 1
        %s656 = scalar_select %p655, %s35, 1
        %s657 = smul.addr %s656, 4
        %s658 = smul.addr %s657, 4
        %s659 = scalar_lea.vmem %s11, %s658
        %p660 = pneg %p344
        %p661 = pneg %p341
        %p662 = scmp.lt.s32.totalorder %s35, 1
        %s663 = scalar_select %p662, %s35, 1
        %s664 = scalar_lea.vmem %s12, %s663
        %p665 = pneg %p370
        %p666 = pneg %p367
        %p667 = scmp.lt.s32.totalorder %s35, 1
        %s668 = scalar_select %p667, %s35, 1
        %s669 = smul.addr %s668, 16
        %s670 = smul.addr %s669, 4
        %s671 = scalar_lea.vmem %s13, %s670
        %p672 = pneg %p396
        %p673 = pneg %p393
        %p674 = scmp.lt.s32.totalorder %s35, 1
        %s675 = scalar_select %p674, %s35, 1
        %s676 = scalar_lea.vmem %s14, %s675
        %p677 = pneg %p422
        %p678 = pneg %p419
        %p679 = pneg %p443
        %p680 = pneg %p440
        %p681 = pneg %p469
        %p682 = pneg %p466
        %s683 = sand.u32 %s456, 1
        %s684 = scalar_lea.sflag [#allocation5], %s683
        %s685 = sand.u32 %s456, 1
        %s686 = scalar_lea.vmem [#allocation4], %s685
        %p687 = scmp.lt.s32.totalorder %s34, 1
        %s688 = scalar_select %p687, %s34, 1
        %s689 = smul.addr %s688, 2
        %s690 = smul.addr %s689, 8
        %s691 = scalar_lea.vmem %s0, %s690
        %p692 = scmp.lt.s32.totalorder %s34, 1
        %s693 = scalar_select %p692, %s34, 1
        %s694 = smul.addr %s693, 8
        %s695 = scalar_lea.vmem %s1, %s694
        %p696 = scmp.lt.s32.totalorder %s35, 1
        %s697 = scalar_select %p696, %s35, 1
        %s698 = scalar_lea.vmem %s3, %s697
        %p699 = scmp.lt.s32.totalorder %s35, 1
        %s700 = scalar_select %p699, %s35, 1
        %s701 = scalar_lea.vmem %s4, %s700
        %p702 = scmp.lt.s32.totalorder %s35, 1
        %s703 = scalar_select %p702, %s35, 1
        %s704 = smul.addr %s703, 4
        %s705 = smul.addr %s704, 4
        %s706 = scalar_lea.vmem %s5, %s705
        %p707 = scmp.lt.s32.totalorder %s35, 1
        %s708 = scalar_select %p707, %s35, 1
        %s709 = scalar_lea.vmem %s6, %s708
        %p710 = scmp.lt.s32.totalorder %s35, 1
        %s711 = scalar_select %p710, %s35, 1
        %s712 = smul.addr %s711, 4
        %s713 = smul.addr %s712, 4
        %s714 = scalar_lea.vmem %s7, %s713
        %p715 = scmp.lt.s32.totalorder %s35, 1
        %s716 = scalar_select %p715, %s35, 1
        %s717 = scalar_lea.vmem %s8, %s716
        %p718 = scmp.lt.s32.totalorder %s35, 1
        %s719 = scalar_select %p718, %s35, 1
        %s720 = scalar_lea.vmem %s9, %s719
        %p721 = scmp.lt.s32.totalorder %s35, 1
        %s722 = scalar_select %p721, %s35, 1
        %s723 = scalar_lea.vmem %s10, %s722
        %p724 = scmp.lt.s32.totalorder %s35, 1
        %s725 = scalar_select %p724, %s35, 1
        %s726 = smul.addr %s725, 4
        %s727 = smul.addr %s726, 4
        %s728 = scalar_lea.vmem %s11, %s727
        %p729 = scmp.lt.s32.totalorder %s35, 1
        %s730 = scalar_select %p729, %s35, 1
        %s731 = scalar_lea.vmem %s12, %s730
        %p732 = scmp.lt.s32.totalorder %s35, 1
        %s733 = scalar_select %p732, %s35, 1
        %s734 = smul.addr %s733, 16
        %s735 = smul.addr %s734, 4
        %s736 = scalar_lea.vmem %s13, %s735
        %p737 = scmp.lt.s32.totalorder %s35, 1
        %s738 = scalar_select %p737, %s35, 1
        %s739 = scalar_lea.vmem %s14, %s738
        %p741 = scmp.eq.s32.totalorder %s35, 0
        // Predicated region
        $region85: #{image_encoder_forward.1} parent=83 // pred_check
          %p742 = pneg %p741
        $region86: #{image_encoder_forward.1} parent=83 // pred_check_branch
          %744 = sbr.rel (%p742) target = $region88
        $region87: #{image_encoder_forward.1} parent=83 // pred_region
          %v745 = vld [vmem:[%s691] sm:$0xff]
          %v746 = vld [vmem:[%s691 + $0x8] sm:$0xff]
          %v747 = vpack.c.bf16 %v745, %v745
          %v748 = vpack.c.bf16 %v746, %v746
          %v749 = vld [vmem:[%s2] sm:$0xf]
          %v750 = vld [vmem:[%s2 + $0x4] sm:$0xf]
          %v751 = vld [vmem:[%s2 + $0x8] sm:$0xf]
          %v752 = vld [vmem:[%s2 + $0xc] sm:$0xf]
          %v753 = vld [vmem:[%s2 + $0x10] sm:$0xf]
          %v754 = vld [vmem:[%s2 + $0x14] sm:$0xf]
          %v755 = vld [vmem:[%s2 + $0x18] sm:$0xf]
          %v756 = vld [vmem:[%s2 + $0x1c] sm:$0xf]
          %v757 = vld [vmem:[%s2 + $0x20] sm:$0xf]
          %v758 = vld [vmem:[%s2 + $0x24] sm:$0xf]
          %v759 = vld [vmem:[%s2 + $0x28] sm:$0xf]
          %v760 = vld [vmem:[%s2 + $0x2c] sm:$0xf]
          %v761 = vld [vmem:[%s2 + $0x30] sm:$0xf]
          %v762 = vld [vmem:[%s2 + $0x34] sm:$0xf]
          %v763 = vld [vmem:[%s2 + $0x38] sm:$0xf]
          %v764 = vld [vmem:[%s2 + $0x3c] sm:$0xf]
          %v765 = vld [vmem:[%s2 + $0x40] sm:$0xf]
          %v766 = vld [vmem:[%s2 + $0x44] sm:$0xf]
          %v767 = vld [vmem:[%s2 + $0x48] sm:$0xf]
          %v768 = vld [vmem:[%s2 + $0x4c] sm:$0xf]
          %v769 = vld [vmem:[%s2 + $0x50] sm:$0xf]
          %v770 = vld [vmem:[%s2 + $0x54] sm:$0xf]
          %v771 = vld [vmem:[%s2 + $0x58] sm:$0xf]
          %v772 = vld [vmem:[%s2 + $0x5c] sm:$0xf]
          %v773 = vld [vmem:[%s2 + $0x60] sm:$0xf]
          %v774 = vld [vmem:[%s2 + $0x64] sm:$0xf]
          %v775 = vld [vmem:[%s2 + $0x68] sm:$0xf]
          %v776 = vld [vmem:[%s2 + $0x6c] sm:$0xf]
          %v777 = vld [vmem:[%s2 + $0x70] sm:$0xf]
          %v778 = vld [vmem:[%s2 + $0x74] sm:$0xf]
          %v779 = vld [vmem:[%s2 + $0x78] sm:$0xf]
          %v780 = vld [vmem:[%s2 + $0x7c] sm:$0xf]
          %v781 = vld [vmem:[%s695] sm:$0xff]
          %v814 = vunpack.c.l.b16 %v749
          %v815 = vunpack.c.l.b16 %v750
          %v816 = vunpack.c.l.b16 %v751
          %v817 = vunpack.c.l.b16 %v752
          %v818 = vunpack.c.l.b16 %v753
          %v819 = vunpack.c.l.b16 %v754
          %v820 = vunpack.c.l.b16 %v755
          %v821 = vunpack.c.l.b16 %v756
          %v822 = vunpack.c.l.b16 %v757
          %v823 = vunpack.c.l.b16 %v758
          %v824 = vunpack.c.l.b16 %v759
          %v825 = vunpack.c.l.b16 %v760
          %v826 = vunpack.c.l.b16 %v761
          %v827 = vunpack.c.l.b16 %v762
          %v828 = vunpack.c.l.b16 %v763
          %v829 = vunpack.c.l.b16 %v764
          %v830 = vunpack.c.l.b16 %v765
          %v831 = vunpack.c.l.b16 %v766
          %v832 = vunpack.c.l.b16 %v767
          %v833 = vunpack.c.l.b16 %v768
          %v834 = vunpack.c.l.b16 %v769
          %v835 = vunpack.c.l.b16 %v770
          %v836 = vunpack.c.l.b16 %v771
          %v837 = vunpack.c.l.b16 %v772
          %v838 = vunpack.c.l.b16 %v773
          %v839 = vunpack.c.l.b16 %v774
          %v840 = vunpack.c.l.b16 %v775
          %v841 = vunpack.c.l.b16 %v776
          %v842 = vunpack.c.l.b16 %v777
          %v843 = vunpack.c.l.b16 %v778
          %v844 = vunpack.c.l.b16 %v779
          %v845 = vunpack.c.l.b16 %v780
          %v846 = vpack.c.b16 %v815, %v814
          %v847 = vpack.c.b16 %v817, %v816
          %v848 = vpack.c.b16 %v819, %v818
          %v849 = vpack.c.b16 %v821, %v820
          %v850 = vpack.c.b16 %v823, %v822
          %v851 = vpack.c.b16 %v825, %v824
          %v852 = vpack.c.b16 %v827, %v826
          %v853 = vpack.c.b16 %v829, %v828
          %v854 = vpack.c.b16 %v831, %v830
          %v855 = vpack.c.b16 %v833, %v832
          %v856 = vpack.c.b16 %v835, %v834
          %v857 = vpack.c.b16 %v837, %v836
          %v858 = vpack.c.b16 %v839, %v838
          %v859 = vpack.c.b16 %v841, %v840
          %v860 = vpack.c.b16 %v843, %v842
          %v861 = vpack.c.b16 %v845, %v844
          %878 = vmatpush.bf16.msra.mxu0 %v853
          %879 = vmatpush.bf16.msra.mxu0 %v852
          %880 = vmatpush.bf16.msra.mxu0 %v851
          %881 = vmatpush.bf16.msra.mxu0 %v850
          %882 = vmatpush.bf16.msra.mxu0 %v849
          %883 = vmatpush.bf16.msra.mxu0 %v848
          %884 = vmatpush.bf16.msra.mxu0 %v847
          %885 = vmatpush.bf16.msra.mxu0 %v846
          %886 = vmatmul.bf16.gmra.mxu0 %v747
          %v887 = vpop.f32.mrf.mxu0
          %v888 = vadd.f32 %v781, %v887
          %v889 = vpop.f32.mrf.mxu0
          %890 = vdwg.mxu0
          %891 = vmatpush.bf16.msra.mxu0 %v861
          %892 = vmatpush.bf16.msra.mxu0 %v860
          %893 = vmatpush.bf16.msra.mxu0 %v859
          %894 = vmatpush.bf16.msra.mxu0 %v858
          %895 = vmatpush.bf16.msra.mxu0 %v857
          %896 = vmatpush.bf16.msra.mxu0 %v856
          %897 = vmatpush.bf16.msra.mxu0 %v855
          %898 = vmatpush.bf16.msra.mxu0 %v854
          %899 = vmatmul.bf16.gmra.mxu0 %v748
          %v900 = vpop.f32.mrf.mxu0
          %v901 = vadd.f32 %v888, %v900
          %v902 = vpop.f32.mrf.mxu0
          %903 = vdwg.mxu0
          %vm904 = vcmask 261120
          %905 = vst.msk [vmem:[#allocation2] sm:$0xff] %vm904, %v901
        $region88: #{image_encoder_forward.1} parent=83 // pred_fallthru
          _
        %v906 = vld [vmem:[#allocation2] sm:$0xff]
        %v907 = vld [vmem:[%s698] sm:$0x1]
        %v908 = vld [vmem:[%s701] sm:$0x1]
        %vm909 = vcmask 261120
        %v910 = vsel %vm909, %v906, 0.0
        %911 = vadd.xlane.f32.xlu0 %v910
        %v912 = vpop.xlane.xlu0 %911
        %v913 = vrcp.pop 32.0
        %v914 = vmul.f32 32.0, %v913
        %v915 = vsub.f32 1.0, %v914
        %v916 = vmul.f32 %v913, %v915
        %v917 = vadd.f32 %v913, %v916
        %vm918 = vweird.f32 %v913
        %v919 = vsel %vm918, %v913, %v917
        %v920 = vmul.f32 %v912, %v919
        %v921 = vsub.f32 %v906, %v920
        %v922 = vmul.f32 %v921, %v921
        %v923 = vsel %vm909, %v922, 0.0
        %924 = vadd.xlane.f32.xlu0 %v923
        %v925 = vpop.xlane.xlu0 %924
        %v926 = vmul.f32 %v925, %v919
        %v927 = vadd.f32 %v926, 1e-05
        %v928 = vrsqrt.pop %v927
        %v929 = vmul.f32 %v928, %v927
        %v930 = vmul.f32 %v929, %v928
        %v931 = vmul.f32 0.5, %v930
        %v932 = vsub.f32 1.5, %v931
        %v933 = vmul.f32 %v928, %v932
        %vm934 = vweird.f32 %v927
        %vm935 = vweird.f32 %v928
        %vm936 = vmor %vm934, %vm935
        %v937 = vsel %vm936, %v928, %v933
        %v938 = vmul.f32 %v921, %v937
        %v940 = vperm.slane %v907, 0
        %v942 = vmul.f32 %v938, %v940
        %v944 = vperm.slane %v908, 0
        %v946 = vadd.f32 %v942, %v944
        %v947 = vpack.c.bf16 %v946, %v946
        %v948 = vld [vmem:[%s706] sm:$0xf]
        %v949 = vld [vmem:[%s706 + $0x4] sm:$0xf]
        %v950 = vld [vmem:[%s706 + $0x8] sm:$0xf]
        %v951 = vld [vmem:[%s706 + $0xc] sm:$0xf]
        %v952 = vld [vmem:[%s709] sm:$0x1]
        %v954 = vperm.slane %v952, 0
        %v960 = vunpack.c.l.b16 %v948
        %v961 = vunpack.c.l.b16 %v949
        %v962 = vunpack.c.l.b16 %v950
        %v963 = vunpack.c.l.b16 %v951
        %v964 = vpack.c.b16 %v961, %v960
        %v965 = vpack.c.b16 %v963, %v962
        %v969 = vsel %vm909, %v947, 0
        %971 = vmatpush.bf16.msra.mxu0 0
        %972 = vmatpush.bf16.msra.mxu0 0
        %973 = vmatpush.bf16.msra.mxu0 0
        %974 = vmatpush.bf16.msra.mxu0 0
        %975 = vmatpush.bf16.msra.mxu0 0
        %976 = vmatpush.bf16.msra.mxu0 0
        %977 = vmatpush.bf16.msra.mxu0 %v965
        %978 = vmatpush.bf16.msra.mxu0 %v964
        %979 = vmatmul.bf16.gmra.mxu0 %v969
        %v980 = vpop.f32.mrf.mxu0
        %v981 = vadd.f32 %v954, %v980
        %v982 = vpop.f32.mrf.mxu0
        %983 = vdwg.mxu0
        %v984 = vmul.f32 %v981, 0.25
        %v985 = vlaneseq
        %v986 = vand.u32 %v985, 127
        %vm987 = vcmp.lt.s32.totalorder %v986, 5
        %v988 = vpack.c.bf16 %v984, %v984
        %v989 = vpack.c.bf16 %v981, %v981
        %v991 = vunpack.c.l.b16 %v989
        %v992 = vpack.c.b16 %v991, %v991
        %993 = vrot.lane.b32.xlu0 %v992, 96
        %v994 = vpop.permute.xlu0 %993
        %vm995 = vcmask 130048
        %v997 = vsel %vm995, %v988, 0
        %v1000 = vsel %vm995, %v994, 0
        %1002 = vmatpush.bf16.xpose.msra.mxu0 0
        %1003 = vmatpush.bf16.xpose.msra.mxu0 0
        %1004 = vmatpush.bf16.xpose.msra.mxu0 0
        %1005 = vmatpush.bf16.xpose.msra.mxu0 0
        %1006 = vmatpush.bf16.xpose.msra.mxu0 0
        %1007 = vmatpush.bf16.xpose.msra.mxu0 0
        %1008 = vmatpush.bf16.xpose.msra.mxu0 0
        %1009 = vmatpush.bf16.xpose.msra.mxu0 %v1000
        %1010 = vmatmul.bf16.gmra.mxu0 %v997
        %v1011 = vpop.f32.mrf.mxu0
        %v1012 = vadd.f32 0.0, %v1011
        %v1013 = vpop.f32.mrf.mxu0
        %1014 = vdwg.mxu0
        %v1015 = vsel %vm987, 1, 0
        %vm1016 = vcmp.eq.s32.totalorder %v1015, 1
        %v1017 = vsel %vm1016, %v1012, -1e+30
        %vm1018 = vcmask 64512
        %v1019 = vsel %vm1018, %v1017, -inf
        %1020 = vmax.xlane.f32.xlu0 %v1019
        %v1021 = vpop.xlane.xlu0 %1020
        %v1022 = vsub.f32 %v1017, %v1021
        %v1023 = vmul.f32 %v1022, 1.442695
        %v1024 = vpow.pop %v1023
        %v1025 = vsel %vm1018, %v1024, 0.0
        %1026 = vadd.xlane.f32.xlu0 %v1025
        %v1027 = vpop.xlane.xlu0 %1026
        %v1028 = vpack.c.bf16 %v1024, %v1024
        %1029 = vrot.lane.b32.xlu0 %v992, 64
        %v1030 = vpop.permute.xlu0 %1029
        %v1032 = vsel %vm1018, %v1028, 0
        %vm1034 = vcmask 1043456
        %v1036 = vsel %vm1034, %v1030, 0
        %1038 = vmatpush.bf16.msra.mxu0 0
        %1039 = vmatpush.bf16.msra.mxu0 0
        %1040 = vmatpush.bf16.msra.mxu0 0
        %1041 = vmatpush.bf16.msra.mxu0 0
        %1042 = vmatpush.bf16.msra.mxu0 0
        %1043 = vmatpush.bf16.msra.mxu0 0
        %1044 = vmatpush.bf16.msra.mxu0 0
        %1045 = vmatpush.bf16.msra.mxu0 %v1036
        %1046 = vmatmul.bf16.gmra.mxu0 %v1032
        %v1047 = vpop.f32.mrf.mxu0
        %v1048 = vadd.f32 0.0, %v1047
        %v1049 = vpop.f32.mrf.mxu0
        %1050 = vdwg.mxu0
        %v1051 = vrcp.pop %v1027
        %v1052 = vmul.f32 %v1048, %v1051
        %1053 = vst.msk [vmem:[#allocation3] sm:$0xff] %vm995, %v1052
        %v1055 = vunpack.c.l.b16 %v988
        %v1056 = vpack.c.b16 %v1055, %v1055
        %1057 = vrot.lane.b32.xlu0 %v1056, 112
        %v1058 = vpop.permute.xlu0 %1057
        %1059 = vrot.lane.b32.xlu0 %v992, 80
        %v1060 = vpop.permute.xlu0 %1059
        %v1062 = vsel %vm995, %v1058, 0
        %v1065 = vsel %vm995, %v1060, 0
        %1067 = vmatpush.bf16.xpose.msra.mxu0 0
        %1068 = vmatpush.bf16.xpose.msra.mxu0 0
        %1069 = vmatpush.bf16.xpose.msra.mxu0 0
        %1070 = vmatpush.bf16.xpose.msra.mxu0 0
        %1071 = vmatpush.bf16.xpose.msra.mxu0 0
        %1072 = vmatpush.bf16.xpose.msra.mxu0 0
        %1073 = vmatpush.bf16.xpose.msra.mxu0 0
        %1074 = vmatpush.bf16.xpose.msra.mxu0 %v1065
        %1075 = vmatmul.bf16.gmra.mxu0 %v1062
        %v1076 = vpop.f32.mrf.mxu0
        %v1077 = vadd.f32 0.0, %v1076
        %v1078 = vpop.f32.mrf.mxu0
        %1079 = vdwg.mxu0
        %v1080 = vsel %vm1016, %v1077, -1e+30
        %v1081 = vsel %vm1018, %v1080, -inf
        %1082 = vmax.xlane.f32.xlu0 %v1081
        %v1083 = vpop.xlane.xlu0 %1082
        %v1084 = vsub.f32 %v1080, %v1083
        %v1085 = vmul.f32 %v1084, 1.442695
        %v1086 = vpow.pop %v1085
        %v1087 = vsel %vm1018, %v1086, 0.0
        %1088 = vadd.xlane.f32.xlu0 %v1087
        %v1089 = vpop.xlane.xlu0 %1088
        %v1090 = vpack.c.bf16 %v1086, %v1086
        %1091 = vrot.lane.b32.xlu0 %v992, 48
        %v1092 = vpop.permute.xlu0 %1091
        %v1094 = vsel %vm1018, %v1090, 0
        %v1097 = vsel %vm1034, %v1092, 0
        %1099 = vmatpush.bf16.msra.mxu0 0
        %1100 = vmatpush.bf16.msra.mxu0 0
        %1101 = vmatpush.bf16.msra.mxu0 0
        %1102 = vmatpush.bf16.msra.mxu0 0
        %1103 = vmatpush.bf16.msra.mxu0 0
        %1104 = vmatpush.bf16.msra.mxu0 0
        %1105 = vmatpush.bf16.msra.mxu0 0
        %1106 = vmatpush.bf16.msra.mxu0 %v1097
        %1107 = vmatmul.bf16.gmra.mxu0 %v1094
        %v1108 = vpop.f32.mrf.mxu0
        %v1109 = vadd.f32 0.0, %v1108
        %v1110 = vpop.f32.mrf.mxu0
        %1111 = vdwg.mxu0
        %v1112 = vrcp.pop %v1089
        %v1113 = vmul.f32 %v1109, %v1112
        %1115 = vrot.lane.b32.xlu0 %v1113, 16
        %v1116 = vpop.permute.xlu0 %1115
        %vm1118 = vcmask 261248
        %1119 = vst.msk [vmem:[#allocation3] sm:$0xff] %vm1118, %v1116
        %v1120 = vld [vmem:[#allocation3] sm:$0xff]
        %v1121 = vpack.c.bf16 %v1120, %v1120
        %v1122 = vld [vmem:[%s714] sm:$0xf]
        %v1123 = vld [vmem:[%s714 + $0x4] sm:$0xf]
        %v1124 = vld [vmem:[%s714 + $0x8] sm:$0xf]
        %v1125 = vld [vmem:[%s714 + $0xc] sm:$0xf]
        %v1126 = vld [vmem:[%s717] sm:$0x1]
        %v1128 = vperm.slane %v1126, 0
        %v1134 = vunpack.c.l.b16 %v1122
        %v1135 = vunpack.c.l.b16 %v1123
        %v1136 = vunpack.c.l.b16 %v1124
        %v1137 = vunpack.c.l.b16 %v1125
        %v1138 = vpack.c.b16 %v1135, %v1134
        %v1139 = vpack.c.b16 %v1137, %v1136
        %v1143 = vsel %vm909, %v1121, 0
        %1145 = vmatpush.bf16.msra.mxu0 0
        %1146 = vmatpush.bf16.msra.mxu0 0
        %1147 = vmatpush.bf16.msra.mxu0 0
        %1148 = vmatpush.bf16.msra.mxu0 0
        %1149 = vmatpush.bf16.msra.mxu0 0
        %1150 = vmatpush.bf16.msra.mxu0 0
        %1151 = vmatpush.bf16.msra.mxu0 %v1139
        %1152 = vmatpush.bf16.msra.mxu0 %v1138
        %1153 = vmatmul.bf16.gmra.mxu0 %v1143
        %v1154 = vpop.f32.mrf.mxu0
        %v1155 = vadd.f32 %v1128, %v1154
        %v1156 = vpop.f32.mrf.mxu0
        %1157 = vdwg.mxu0
        %v1158 = vadd.f32 %v906, %v1155
        %v1159 = vld [vmem:[%s720] sm:$0x1]
        %v1160 = vld [vmem:[%s723] sm:$0x1]
        %v1161 = vsel %vm909, %v1158, 0.0
        %1162 = vadd.xlane.f32.xlu0 %v1161
        %v1163 = vpop.xlane.xlu0 %1162
        %v1164 = vmul.f32 %v1163, %v919
        %v1165 = vsub.f32 %v1158, %v1164
        %v1166 = vmul.f32 %v1165, %v1165
        %v1167 = vsel %vm909, %v1166, 0.0
        %1168 = vadd.xlane.f32.xlu0 %v1167
        %v1169 = vpop.xlane.xlu0 %1168
        %v1170 = vmul.f32 %v1169, %v919
        %v1171 = vadd.f32 %v1170, 1e-05
        %v1172 = vrsqrt.pop %v1171
        %v1173 = vmul.f32 %v1172, %v1171
        %v1174 = vmul.f32 %v1173, %v1172
        %v1175 = vmul.f32 0.5, %v1174
        %v1176 = vsub.f32 1.5, %v1175
        %v1177 = vmul.f32 %v1172, %v1176
        %vm1178 = vweird.f32 %v1171
        %vm1179 = vweird.f32 %v1172
        %vm1180 = vmor %vm1178, %vm1179
        %v1181 = vsel %vm1180, %v1172, %v1177
        %v1182 = vmul.f32 %v1165, %v1181
        %v1184 = vperm.slane %v1159, 0
        %v1186 = vmul.f32 %v1182, %v1184
        %v1188 = vperm.slane %v1160, 0
        %v1190 = vadd.f32 %v1186, %v1188
        %v1191 = vpack.c.bf16 %v1190, %v1190
        %v1192 = vld [vmem:[%s728] sm:$0xf]
        %v1193 = vld [vmem:[%s728 + $0x4] sm:$0xf]
        %v1194 = vld [vmem:[%s728 + $0x8] sm:$0xf]
        %v1195 = vld [vmem:[%s728 + $0xc] sm:$0xf]
        %v1196 = vld [vmem:[%s731] sm:$0x1]
        %v1198 = vperm.slane %v1196, 0
        %v1204 = vunpack.c.l.b16 %v1192
        %v1205 = vunpack.c.l.b16 %v1193
        %v1206 = vunpack.c.l.b16 %v1194
        %v1207 = vunpack.c.l.b16 %v1195
        %v1208 = vpack.c.b16 %v1205, %v1204
        %v1209 = vpack.c.b16 %v1207, %v1206
        %v1213 = vsel %vm909, %v1191, 0
        %1215 = vmatpush.bf16.msra.mxu0 0
        %1216 = vmatpush.bf16.msra.mxu0 0
        %1217 = vmatpush.bf16.msra.mxu0 0
        %1218 = vmatpush.bf16.msra.mxu0 0
        %1219 = vmatpush.bf16.msra.mxu0 0
        %1220 = vmatpush.bf16.msra.mxu0 0
        %1221 = vmatpush.bf16.msra.mxu0 %v1209
        %1222 = vmatpush.bf16.msra.mxu0 %v1208
        %1223 = vmatmul.bf16.gmra.mxu0 %v1213
        %v1224 = vpop.f32.mrf.mxu0
        %v1225 = vadd.f32 %v1198, %v1224
        %v1226 = vpop.f32.mrf.mxu0
        %1227 = vdwg.mxu0
        %v1228 = vmul.f32 %v1225, 0.5
        %v1229 = vmul.f32 %v1225, 0.044715
        %v1230 = vmul.f32 %v1229, %v1225
        %v1231 = vmul.f32 %v1230, %v1225
        %v1232 = vadd.f32 %v1225, %v1231
        %v1233 = vmul.f32 %v1232, 0.7978846
        %v1234 = vtanh.pop %v1233
        %v1235 = vadd.f32 %v1234, 1.0
        %v1236 = vmul.f32 %v1228, %v1235
        %v1237 = vpack.c.bf16 %v1236, %v1236
        %v1238 = vld [vmem:[%s736] sm:$0xf]
        %v1239 = vld [vmem:[%s736 + $0x4] sm:$0xf]
        %v1240 = vld [vmem:[%s736 + $0x8] sm:$0xf]
        %v1241 = vld [vmem:[%s736 + $0xc] sm:$0xf]
        %v1242 = vld [vmem:[%s736 + $0x10] sm:$0xf]
        %v1243 = vld [vmem:[%s736 + $0x14] sm:$0xf]
        %v1244 = vld [vmem:[%s736 + $0x18] sm:$0xf]
        %v1245 = vld [vmem:[%s736 + $0x1c] sm:$0xf]
        %v1246 = vld [vmem:[%s736 + $0x20] sm:$0xf]
        %v1247 = vld [vmem:[%s736 + $0x24] sm:$0xf]
        %v1248 = vld [vmem:[%s736 + $0x28] sm:$0xf]
        %v1249 = vld [vmem:[%s736 + $0x2c] sm:$0xf]
        %v1250 = vld [vmem:[%s736 + $0x30] sm:$0xf]
        %v1251 = vld [vmem:[%s736 + $0x34] sm:$0xf]
        %v1252 = vld [vmem:[%s736 + $0x38] sm:$0xf]
        %v1253 = vld [vmem:[%s736 + $0x3c] sm:$0xf]
        %v1254 = vld [vmem:[%s739] sm:$0x1]
        %v1256 = vperm.slane %v1254, 0
        %v1274 = vunpack.c.l.b16 %v1238
        %v1275 = vunpack.c.l.b16 %v1239
        %v1276 = vunpack.c.l.b16 %v1240
        %v1277 = vunpack.c.l.b16 %v1241
        %v1278 = vunpack.c.l.b16 %v1242
        %v1279 = vunpack.c.l.b16 %v1243
        %v1280 = vunpack.c.l.b16 %v1244
        %v1281 = vunpack.c.l.b16 %v1245
        %v1282 = vunpack.c.l.b16 %v1246
        %v1283 = vunpack.c.l.b16 %v1247
        %v1284 = vunpack.c.l.b16 %v1248
        %v1285 = vunpack.c.l.b16 %v1249
        %v1286 = vunpack.c.l.b16 %v1250
        %v1287 = vunpack.c.l.b16 %v1251
        %v1288 = vunpack.c.l.b16 %v1252
        %v1289 = vunpack.c.l.b16 %v1253
        %v1290 = vpack.c.b16 %v1275, %v1274
        %v1291 = vpack.c.b16 %v1277, %v1276
        %v1292 = vpack.c.b16 %v1279, %v1278
        %v1293 = vpack.c.b16 %v1281, %v1280
        %v1294 = vpack.c.b16 %v1283, %v1282
        %v1295 = vpack.c.b16 %v1285, %v1284
        %v1296 = vpack.c.b16 %v1287, %v1286
        %v1297 = vpack.c.b16 %v1289, %v1288
        %1306 = vmatpush.bf16.msra.mxu0 %v1297
        %1307 = vmatpush.bf16.msra.mxu0 %v1296
        %1308 = vmatpush.bf16.msra.mxu0 %v1295
        %1309 = vmatpush.bf16.msra.mxu0 %v1294
        %1310 = vmatpush.bf16.msra.mxu0 %v1293
        %1311 = vmatpush.bf16.msra.mxu0 %v1292
        %1312 = vmatpush.bf16.msra.mxu0 %v1291
        %1313 = vmatpush.bf16.msra.mxu0 %v1290
        %1314 = vmatmul.bf16.gmra.mxu0 %v1237
        %v1315 = vpop.f32.mrf.mxu0
        %v1316 = vadd.f32 %v1256, %v1315
        %v1317 = vpop.f32.mrf.mxu0
        %1318 = vdwg.mxu0
        %v1319 = vadd.f32 %v1158, %v1316
        %1320 = vst.msk [vmem:[#allocation2] sm:$0xff] %vm909, %v1319
        %p1321 = scmp.eq.s32.totalorder %s35, 1
        // Predicated region
        $region89: #{image_encoder_forward.1} parent=83 // pred_check
          %p1322 = pneg %p1321
        $region90: #{image_encoder_forward.1} parent=83 // pred_check_branch
          %1324 = sbr.rel (%p1322) target = $region92
        $region91: #{image_encoder_forward.1} parent=83 // pred_region
          %v1325 = vpack.c.bf16 %v1319, %v1319
          %v1326 = vld [vmem:[%s15] sm:$0xf]
          %v1327 = vld [vmem:[%s15 + $0x4] sm:$0xf]
          %v1328 = vld [vmem:[%s15 + $0x8] sm:$0xf]
          %v1329 = vld [vmem:[%s15 + $0xc] sm:$0xf]
          %v1334 = vunpack.c.l.b16 %v1326
          %v1335 = vunpack.c.l.b16 %v1327
          %v1336 = vunpack.c.l.b16 %v1328
          %v1337 = vunpack.c.l.b16 %v1329
          %v1338 = vpack.c.b16 %v1335, %v1334
          %v1339 = vpack.c.b16 %v1337, %v1336
          %v1343 = vsel %vm909, %v1325, 0
          %1345 = vmatpush.bf16.msra.mxu0 0
          %1346 = vmatpush.bf16.msra.mxu0 0
          %1347 = vmatpush.bf16.msra.mxu0 0
          %1348 = vmatpush.bf16.msra.mxu0 0
          %1349 = vmatpush.bf16.msra.mxu0 0
          %1350 = vmatpush.bf16.msra.mxu0 0
          %1351 = vmatpush.bf16.msra.mxu0 %v1339
          %1352 = vmatpush.bf16.msra.mxu0 %v1338
          %1353 = vmatmul.bf16.gmra.mxu0 %v1343
          %v1354 = vpop.f32.mrf.mxu0
          %v1355 = vadd.f32 0.0, %v1354
          %v1356 = vpop.f32.mrf.mxu0
          %1357 = vdwg.mxu0
          %v1358 = vmul.f32 %v1355, %v1355
          %vm1359 = vcmask 253952
          %v1360 = vsel %vm1359, %v1358, 0.0
          %1361 = vadd.xlane.f32.xlu0 %v1360
          %v1362 = vpop.xlane.xlu0 %1361
          %v1363 = vrsqrt.pop %v1362
          %v1364 = vmul.f32 %v1363, %v1362
          %v1365 = vmul.f32 %v1364, %v1363
          %v1366 = vmul.f32 0.5, %v1365
          %v1367 = vsub.f32 1.5, %v1366
          %v1368 = vmul.f32 %v1363, %v1367
          %vm1369 = vweird.f32 %v1362
          %vm1370 = vweird.f32 %v1363
          %vm1371 = vmor %vm1369, %vm1370
          %v1372 = vsel %vm1371, %v1363, %v1368
          %v1373 = vmul.f32 %v1355, %v1372
          %1374 = vst.msk [vmem:[%s686] sm:$0x1] %vm1359, %v1373
        $region92: #{image_encoder_forward.1} parent=83 // pred_fallthru
          _
        %s1375 = sand.u32 %s456, 1
        %s1376 = scalar_lea.sflag [#allocation5], %s1375
        %s1377 = sand.u32 %s456, 1
        %s1378 = scalar_lea.vmem [#allocation4], %s1377
        // Predicated region
        $region93: #{image_encoder_forward.1} parent=83 // pred_check
          %p1379 = pneg %p466
        $region94: #{image_encoder_forward.1} parent=83 // pred_check_branch
          %1381 = sbr.rel (%p1379) target = $region96
        $region95: #{image_encoder_forward.1} parent=83 // pred_region
          %1383 = vsyncadd %s1376, 0
          %s1384 = scalar_lea.hbm %s16, %s34
          %s1386 = sshll.u32 %s1378, 4
          %s1387 = int_to_ptr.vmem [resolvable:$true] %s1386
          %s1388 = sshll.u32 %s1384, 4
          %s1389 = int_to_ptr.hbm [resolvable:$true] %s1388
          %1391 = dma.vmem_to_hbm [thread:$0]  %s1387, 16, %s1389, %s1376
        $region96: #{image_encoder_forward.1} parent=83 // pred_fallthru
          _
      $region84: #{image_encoder_forward.1} parent=5 // pred_fallthru
        _
      %p1392 = scmp.le.s32.totalorder 2, %s25
      // Predicated region
      $region97: #{image_encoder_forward.1} parent=5 // pred_check
        %p1393 = pneg %p1392
      $region98: #{image_encoder_forward.1} parent=5 // pred_check_branch
        %1395 = sbr.rel (%p1393) target = $region100
      $region99: #{image_encoder_forward.1} parent=5 // pred_region
        %s1396 = ssub.s32 %s25, 2
        // Predicated region
        $region101: #{image_encoder_forward.1} parent=99 // pred_check
          %p1397 = pneg %p472
        $region102: #{image_encoder_forward.1} parent=99 // pred_check_branch
          %1399 = sbr.rel (%p1397) target = $region104
        $region103: #{image_encoder_forward.1} parent=99 // pred_region
          %s1400 = sand.u32 %s457, 1
          %s1401 = scalar_lea.sflag [#allocation5], %s1400
          %s1402 = sand.u32 %s457, 1
          %s1403 = scalar_lea.vmem [#allocation4], %s1402
          %1405 = dma.done %s1401, 16
        $region104: #{image_encoder_forward.1} parent=99 // pred_fallthru
          _
      $region100: #{image_encoder_forward.1} parent=5 // pred_fallthru
        _
    $region6: #{image_encoder_forward.1} parent=1 // loop_footer
      %s29 = sadd.s32 1, %s25
    $region7: #{image_encoder_forward.1} parent=1 // loop_footer_branch
      %24 = sbr.rel target = $region3
    $region8: #{image_encoder_forward.1} parent=1 // loop_exit
      _
    %1406 = vsyncpa [#allocation5], 1
    %s1407 = scalar_lea.sflag [#allocation5], 1
    %1408 = vsyncpa %s1407, 1

</llo_original>
